<compile_context>
chip_gen: v7x
topology: tpu7x:2x2x1
jax: 0.10.0
libtpu: 0.0.40
codegen_flags: <defaults>
</compile_context>

<pallas_src>
import functools
import math

import jax
import jax.numpy as jnp
from jax.experimental import pallas as pl
from jax.experimental.pallas import tpu as pltpu

_LANE = 128
_VMEM_BUDGET = 44 * 1024 * 1024          # per-step working-set budget (bytes)


def _round_up(n, m):
    return (n + m - 1) // m * m


def _bottleneck_kernel(x_ref, mask_ref, w1_ref, b1_ref, w2_ref, b2_ref,
                       w3_ref, b3_ref, o_ref, *, W, tap_groups):
    """One grid step: a block of whole images flattened to (rows, C)."""
    rows = x_ref.shape[0]

    # ---- conv1 (1x1) + BN1 + ReLU  (bf16 MXU operands, f32 accumulate) ----
    h1 = jnp.dot(x_ref[...], w1_ref[...], preferred_element_type=jnp.float32)
    h1 = jnp.maximum(h1 + b1_ref[...], 0.0)                 # (rows, Wdp) f32

    # ---- conv2 (3x3, stride=1, pad=1) + BN2 + ReLU -------------------------
    # Roll-based im2col WITHOUT materializing a (rows, 9*Wdp) slab: each tap is
    # built on the fly (XLU roll + precomputed border mask fused with the bf16
    # cast) and fed to K~256 accumulating matmuls.
    # NOTE: only valid because every grid block holds whole images (cross-image
    # wrap rows are zeroed by the masks); tiling H*W across the grid would
    # require halo rows.
    def tap(k):
        dy, dx = k // 3 - 1, k % 3 - 1
        off = dy * W + dx
        src = h1 if off == 0 else pltpu.roll(h1, (-off) % rows, axis=0)
        if dy == 0 and dx == 0:
            return src.astype(jnp.bfloat16)
        j = k if k < 4 else k - 1          # mask column (center tap skipped)
        return (src * mask_ref[:, j:j + 1]).astype(jnp.bfloat16)

    acc = None
    for g, group in enumerate(tap_groups):
        cache = {}
        parts = []
        for k in group:                    # duplicates (zero-weight pad) reuse
            if k not in cache:
                cache[k] = tap(k)
            parts.append(cache[k])
        lhs = parts[0] if len(parts) == 1 else jnp.concatenate(parts, axis=1)
        part = jnp.dot(lhs, w2_ref[g], preferred_element_type=jnp.float32)
        acc = part if acc is None else acc + part
    h2 = jnp.maximum(acc + b2_ref[...], 0.0)                # (rows, Wdp) f32

    # ---- conv3 (1x1) + BN3 + residual add + ReLU ---------------------------
    h3 = jnp.dot(h2.astype(jnp.bfloat16), w3_ref[...],
                 preferred_element_type=jnp.float32) + b3_ref[...]
    # Re-read the input for the residual (Cin == Cout); avoids keeping an f32
    # copy of the input live across the three matmuls.
    o_ref[...] = jnp.maximum(h3 + x_ref[...].astype(jnp.float32),
                             0.0).astype(o_ref.dtype)


def _fold_bn(w_oihw, gamma, beta, mean, var, eps=1e-5):
    """Fold eval-mode BatchNorm into the preceding (bias-free) conv."""
    s = gamma / jnp.sqrt(var + eps)
    return w_oihw * s[:, None, None, None], beta - mean * s


def _choose_nb(N, hw, row_target=1024):
    """Whole images per grid step.

    Constraints: rows = nb*hw must be a multiple of 16 (bf16 sublane packing),
    ~row_target MXU rows per step, and >= 2 grid steps whenever possible
    (megacore / v7x dual-TC sharding) instead of collapsing to one big block.
    """
    m = 16 // math.gcd(hw, 16)                       # nb must be a multiple of m
    nb = m * max(1, round(row_target / (hw * m)))
    nb = min(nb, m * (-(-N // m)))                   # no more than padded batch
    if N > m and -(-N // nb) < 2:                    # keep the parallel axis >= 2
        nb = m * max(1, N // (2 * m))
    return nb


def _vmem_bytes(rows, Cp, Wdp, Cop, n_groups, tpg):
    """Rough per-step VMEM working set (double-buffered I/O + temporaries)."""
    bf, f32 = 2, 4
    io = 2 * rows * ((Cp + Cop) * bf + 8 * f32)                 # x / out / mask
    wts = 2 * ((Cp * Wdp + n_groups * tpg * Wdp * Wdp + Wdp * Cop) * bf
               + (2 * Wdp + Cop) * f32)
    tmp = rows * Wdp * (2 * f32 + (1 + 2 * tpg) * bf) + rows * Cop * f32
    return io + wts + tmp


@jax.jit
def bottleneck_pallas(x_nchw, params):
    """x_nchw: (N, Cin, H, W) f32;  params: conv weights + BN running stats."""
    N, Cin, H, W = x_nchw.shape
    hw = H * W

    w1, b1 = _fold_bn(params["conv1_w"], params["bn1_g"], params["bn1_b"],
                      params["bn1_m"], params["bn1_v"])
    w2, b2 = _fold_bn(params["conv2_w"], params["bn2_g"], params["bn2_b"],
                      params["bn2_m"], params["bn2_v"])
    w3, b3 = _fold_bn(params["conv3_w"], params["bn3_g"], params["bn3_b"],
                      params["bn3_m"], params["bn3_v"])

    Wd = w1.shape[0]             # bottleneck width
    Cout = w3.shape[0]           # planes * expansion
    if Cout != Cin:
        raise ValueError("fused kernel covers the stride-1, no-downsample "
                         "block only (Cin must equal Cout)")

    Cp = _round_up(Cin, _LANE)
    Wdp = _round_up(Wd, _LANE)
    Cop = _round_up(Cout, _LANE)

    # ---- weights: matmul layout, lane-padded, bf16 for the MXU -------------
    w1m = jnp.pad(jnp.transpose(w1[:, :, 0, 0], (1, 0)),
                  ((0, Cp - Cin), (0, Wdp - Wd))).astype(jnp.bfloat16)
    w3m = jnp.pad(jnp.transpose(w3[:, :, 0, 0], (1, 0)),
                  ((0, Wdp - Wd), (0, Cop - Cout))).astype(jnp.bfloat16)
    b1r = jnp.pad(b1, (0, Wdp - Wd)).reshape(1, Wdp)
    b2r = jnp.pad(b2, (0, Wdp - Wd)).reshape(1, Wdp)
    b3r = jnp.pad(b3, (0, Cop - Cout)).reshape(1, Cop)

    # conv2 weights as per-tap (9, Wdp, Wdp) slabs, grouped so each partial
    # matmul has K ~= 256 (full MXU depth on v6e/v7x); last group padded with
    # zero-weight duplicate taps.
    w2t = jnp.pad(jnp.transpose(w2, (2, 3, 1, 0)),            # (3,3,I,O)
                  ((0, 0), (0, 0), (0, Wdp - Wd), (0, Wdp - Wd)))
    w2t = w2t.reshape(9, Wdp, Wdp)
    tpg = max(1, 256 // Wdp)                                  # taps per group
    n_groups = -(-9 // tpg)
    w2g = jnp.zeros((n_groups, tpg * Wdp, Wdp), jnp.float32)
    tap_groups = []
    for g in range(n_groups):
        idx = []
        for s in range(tpg):
            k = g * tpg + s
            if k < 9:
                w2g = w2g.at[g, s * Wdp:(s + 1) * Wdp, :].set(w2t[k])
                idx.append(k)
            else:
                idx.append(idx[-1])        # dummy repeat, weight rows stay zero
        tap_groups.append(tuple(idx))
    w2g = w2g.astype(jnp.bfloat16)

    # ---- block sizing / VMEM budget ----------------------------------------
    nb = _choose_nb(N, hw)
    m = 16 // math.gcd(hw, 16)
    while nb > m and _vmem_bytes(nb * hw, Cp, Wdp, Cop, n_groups, tpg) > _VMEM_BUDGET:
        nb -= m
    N_pad = -(-N // nb) * nb
    block_rows = nb * hw
    est = _vmem_bytes(block_rows, Cp, Wdp, Cop, n_groups, tpg)
    vmem_limit = int(min(max(est * 5 // 4, 32 << 20), 56 << 20))

    # ---- activations: NCHW -> lane-padded bf16 (N_pad*H*W, Cp) rows ---------
    x_rows = jnp.transpose(x_nchw, (0, 2, 3, 1)).reshape(N * hw, Cin)
    x_rows = jnp.pad(x_rows, ((0, (N_pad - N) * hw), (0, Cp - Cin)))
    x_rows = x_rows.astype(jnp.bfloat16)

    # ---- hoisted border masks: one column per non-center tap ----------------
    pix = jnp.arange(hw, dtype=jnp.int32)
    yy, xx = pix // W, pix % W
    cols = []
    for dy in (-1, 0, 1):
        for dx in (-1, 0, 1):
            if dy == 0 and dx == 0:
                continue
            cols.append((yy + dy >= 0) & (yy + dy < H) &
                        (xx + dx >= 0) & (xx + dx < W))
    mask = jnp.stack(cols, axis=1).astype(jnp.float32)        # (hw, 8)
    mask = jnp.tile(mask, (N_pad, 1))                         # (N_pad*hw, 8)

    out_rows = pl.pallas_call(
        functools.partial(_bottleneck_kernel, W=W, tap_groups=tuple(tap_groups)),
        out_shape=jax.ShapeDtypeStruct((N_pad * hw, Cop), jnp.bfloat16),
        grid=(N_pad // nb,),
        in_specs=[
            pl.BlockSpec((block_rows, Cp), lambda i: (i, 0)),
            pl.BlockSpec((block_rows, 8), lambda i: (i, 0)),
            pl.BlockSpec((Cp, Wdp), lambda i: (0, 0)),
            pl.BlockSpec((1, Wdp), lambda i: (0, 0)),
            pl.BlockSpec((n_groups, tpg * Wdp, Wdp), lambda i: (0, 0, 0)),
            pl.BlockSpec((1, Wdp), lambda i: (0, 0)),
            pl.BlockSpec((Wdp, Cop), lambda i: (0, 0)),
            pl.BlockSpec((1, Cop), lambda i: (0, 0)),
        ],
        out_specs=pl.BlockSpec((block_rows, Cop), lambda i: (i, 0)),
        compiler_params=pltpu.CompilerParams(
            dimension_semantics=("parallel",),
            vmem_limit_bytes=vmem_limit),
    )(x_rows, mask, w1m, b1r, w2g, b2r, w3m, b3r)

    out = out_rows[:N * hw, :Cout].astype(jnp.float32).reshape(N, H, W, Cout)
    return jnp.transpose(out, (0, 3, 1, 2))                   # NHWC -> NCHW


# ---------------- pure-JAX reference (for validation) ----------------
def bottleneck_ref(x, p, eps=1e-5):
    def conv(x, w, padding=0):
        return jax.lax.conv_general_dilated(
            x, w, (1, 1), [(padding, padding)] * 2,
            dimension_numbers=("NCHW", "OIHW", "NCHW"))

    def bn(x, g, b, m, v):
        g, b, m, v = (t[None, :, None, None] for t in (g, b, m, v))
        return (x - m) / jnp.sqrt(v + eps) * g + b

    out = jax.nn.relu(bn(conv(x, p["conv1_w"]), p["bn1_g"], p["bn1_b"], p["bn1_m"], p["bn1_v"]))
    out = jax.nn.relu(bn(conv(out, p["conv2_w"], padding=1), p["bn2_g"], p["bn2_b"], p["bn2_m"], p["bn2_v"]))
    out = bn(conv(out, p["conv3_w"]), p["bn3_g"], p["bn3_b"], p["bn3_m"], p["bn3_v"])
    return jax.nn.relu(out + x)


if __name__ == "__main__":
    # Bottleneck(inplanes=16, planes=4): width = 4, out channels = 4*4 = 16,
    # stride=1, downsample=None -> residual shapes match.
    N, inplanes, H, W = 2, 16, 8, 8
    planes = 4
    width = planes            # base_width=64, groups=1
    out_ch = planes * 4       # expansion = 4

    key = jax.random.PRNGKey(0)
    keys = jax.random.split(key, 16)

    x = jax.random.normal(keys[0], (N, inplanes, H, W), jnp.float32)

    def bn_params(k, c):
        kg, kb, km, kv = jax.random.split(k, 4)
        return (0.5 + jax.random.uniform(kg, (c,)),            # gamma
                0.1 * jax.random.normal(kb, (c,)),              # beta
                0.1 * jax.random.normal(km, (c,)),              # running_mean
                0.5 + jax.random.uniform(kv, (c,)))              # running_var > 0

    params = {}
    params["conv1_w"] = 0.1 * jax.random.normal(keys[1], (width, inplanes, 1, 1), jnp.float32)
    params["conv2_w"] = 0.1 * jax.random.normal(keys[2], (width, width, 3, 3), jnp.float32)
    params["conv3_w"] = 0.1 * jax.random.normal(keys[3], (out_ch, width, 1, 1), jnp.float32)
    (params["bn1_g"], params["bn1_b"], params["bn1_m"], params["bn1_v"]) = bn_params(keys[4], width)
    (params["bn2_g"], params["bn2_b"], params["bn2_m"], params["bn2_v"]) = bn_params(keys[5], width)
    (params["bn3_g"], params["bn3_b"], params["bn3_m"], params["bn3_v"]) = bn_params(keys[6], out_ch)

    out = bottleneck_pallas(x, params)
    out = jax.block_until_ready(out)

    ref = bottleneck_ref(x, params)
    assert out.shape == (N, out_ch, H, W), out.shape
    # bf16 MXU operands / bf16 activation I/O with f32 accumulation.
    assert jnp.allclose(out, ref, atol=7e-2, rtol=5e-2), \
        f"max err {jnp.max(jnp.abs(out - ref))}"

    print("KERNEL_OK")
</pallas_src>

<mosaic_0001>
module attributes {stable_mosaic.version = 11 : i64} {
  func.func @_bottleneck_kernel(%arg0: i32, %arg1: memref<64x128xbf16, #tpu.memory_space<vmem>>, %arg2: memref<64x8xf32, #tpu.memory_space<vmem>>, %arg3: memref<128x128xbf16, #tpu.memory_space<vmem>>, %arg4: memref<1x128xf32, #tpu.memory_space<vmem>>, %arg5: memref<5x256x128xbf16, #tpu.memory_space<vmem>>, %arg6: memref<1x128xf32, #tpu.memory_space<vmem>>, %arg7: memref<128x128xbf16, #tpu.memory_space<vmem>>, %arg8: memref<1x128xf32, #tpu.memory_space<vmem>>, %arg9: memref<64x128xbf16, #tpu.memory_space<vmem>>) attributes {dimension_semantics = [#tpu.dimension_semantics<parallel>], iteration_bounds = array<i64: 2>, scalar_prefetch = 0 : i64, scratch_operands = 0 : i64, tpu.core_type = #tpu.core_type<tc>, window_params = [{transform_indices = @transform_0, window_bounds = array<i64: 64, 128>}, {transform_indices = @transform_1, window_bounds = array<i64: 64, 8>}, {pipeline_mode = #tpu.pipeline_mode<synchronous>, transform_indices = @transform_2, window_bounds = array<i64: 128, 128>}, {pipeline_mode = #tpu.pipeline_mode<synchronous>, transform_indices = @transform_3, window_bounds = array<i64: 1, 128>}, {pipeline_mode = #tpu.pipeline_mode<synchronous>, transform_indices = @transform_4, window_bounds = array<i64: 5, 256, 128>}, {pipeline_mode = #tpu.pipeline_mode<synchronous>, transform_indices = @transform_5, window_bounds = array<i64: 1, 128>}, {pipeline_mode = #tpu.pipeline_mode<synchronous>, transform_indices = @transform_6, window_bounds = array<i64: 128, 128>}, {pipeline_mode = #tpu.pipeline_mode<synchronous>, transform_indices = @transform_7, window_bounds = array<i64: 1, 128>}, {transform_indices = @transform_8, window_bounds = array<i64: 64, 128>}]} {
    %c0 = arith.constant 0 : index
    %c0_0 = arith.constant 0 : index
    %0 = vector.load %arg1[%c0, %c0_0] : memref<64x128xbf16, #tpu.memory_space<vmem>>, vector<64x128xbf16>
    %c0_1 = arith.constant 0 : index
    %c0_2 = arith.constant 0 : index
    %1 = vector.load %arg3[%c0_1, %c0_2] : memref<128x128xbf16, #tpu.memory_space<vmem>>, vector<128x128xbf16>
    %cst = arith.constant dense<0.000000e+00> : vector<64x128xf32>
    %2 = tpu.matmul %0, %1, %cst {dimension_numbers = #tpu.dot_dimension_numbers<[1], [0], [0], [1], [0, 0, 1, 1], [], []>} : vector<64x128xbf16>, vector<128x128xbf16>, vector<64x128xf32> -> vector<64x128xf32>
    %c0_3 = arith.constant 0 : index
    %c0_4 = arith.constant 0 : index
    %3 = vector.load %arg4[%c0_3, %c0_4] : memref<1x128xf32, #tpu.memory_space<vmem>>, vector<1x128xf32>
    %4 = vector.broadcast %3 : vector<1x128xf32> to vector<64x128xf32>
    %5 = arith.addf %2, %4 : vector<64x128xf32>
    %cst_5 = arith.constant 0.000000e+00 : f32
    %6 = vector.broadcast %cst_5 : f32 to vector<64x128xf32>
    %7 = arith.maximumf %5, %6 : vector<64x128xf32>
    %c9_i32 = arith.constant 9 : i32
    %8 = tpu.dynamic_rotate %7 by %c9_i32 dim 0 : vector<64x128xf32>, i32 -> vector<64x128xf32>
    %c0_6 = arith.constant 0 : index
    %c0_7 = arith.constant 0 : index
    %9 = vector.load %arg2[%c0_6, %c0_7] : memref<64x8xf32, #tpu.memory_space<vmem>>, vector<64x1xf32>
    %10 = vector.broadcast %9 : vector<64x1xf32> to vector<64x128xf32>
    %11 = arith.mulf %8, %10 : vector<64x128xf32>
    %12 = arith.truncf %11 : vector<64x128xf32> to vector<64x128xbf16>
    %c8_i32 = arith.constant 8 : i32
    %13 = tpu.dynamic_rotate %7 by %c8_i32 dim 0 : vector<64x128xf32>, i32 -> vector<64x128xf32>
    %c0_8 = arith.constant 0 : index
    %c1 = arith.constant 1 : index
    %14 = vector.load %arg2[%c0_8, %c1] : memref<64x8xf32, #tpu.memory_space<vmem>>, vector<64x1xf32>
    %15 = vector.broadcast %14 : vector<64x1xf32> to vector<64x128xf32>
    %16 = arith.mulf %13, %15 : vector<64x128xf32>
    %17 = arith.truncf %16 : vector<64x128xf32> to vector<64x128xbf16>
    %18 = tpu.concatenate %12, %17 in 1 : vector<64x128xbf16>, vector<64x128xbf16> -> vector<64x256xbf16>
    %c0_9 = arith.constant 0 : index
    %c0_10 = arith.constant 0 : index
    %c0_11 = arith.constant 0 : index
    %19 = vector.load %arg5[%c0_9, %c0_10, %c0_11] : memref<5x256x128xbf16, #tpu.memory_space<vmem>>, vector<1x256x128xbf16>
    %20 = vector.shape_cast %19 : vector<1x256x128xbf16> to vector<256x128xbf16>
    %cst_12 = arith.constant dense<0.000000e+00> : vector<64x128xf32>
    %21 = tpu.matmul %18, %20, %cst_12 {dimension_numbers = #tpu.dot_dimension_numbers<[1], [0], [0], [1], [0, 0, 1, 1], [], []>} : vector<64x256xbf16>, vector<256x128xbf16>, vector<64x128xf32> -> vector<64x128xf32>
    %c7_i32 = arith.constant 7 : i32
    %22 = tpu.dynamic_rotate %7 by %c7_i32 dim 0 : vector<64x128xf32>, i32 -> vector<64x128xf32>
    %c0_13 = arith.constant 0 : index
    %c2 = arith.constant 2 : index
    %23 = vector.load %arg2[%c0_13, %c2] : memref<64x8xf32, #tpu.memory_space<vmem>>, vector<64x1xf32>
    %24 = vector.broadcast %23 : vector<64x1xf32> to vector<64x128xf32>
    %25 = arith.mulf %22, %24 : vector<64x128xf32>
    %26 = arith.truncf %25 : vector<64x128xf32> to vector<64x128xbf16>
    %c1_i32 = arith.constant 1 : i32
    %27 = tpu.dynamic_rotate %7 by %c1_i32 dim 0 : vector<64x128xf32>, i32 -> vector<64x128xf32>
    %c0_14 = arith.constant 0 : index
    %c3 = arith.constant 3 : index
    %28 = vector.load %arg2[%c0_14, %c3] : memref<64x8xf32, #tpu.memory_space<vmem>>, vector<64x1xf32>
    %29 = vector.broadcast %28 : vector<64x1xf32> to vector<64x128xf32>
    %30 = arith.mulf %27, %29 : vector<64x128xf32>
    %31 = arith.truncf %30 : vector<64x128xf32> to vector<64x128xbf16>
    %32 = tpu.concatenate %26, %31 in 1 : vector<64x128xbf16>, vector<64x128xbf16> -> vector<64x256xbf16>
    %c1_15 = arith.constant 1 : index
    %c0_16 = arith.constant 0 : index
    %c0_17 = arith.constant 0 : index
    %33 = vector.load %arg5[%c1_15, %c0_16, %c0_17] : memref<5x256x128xbf16, #tpu.memory_space<vmem>>, vector<1x256x128xbf16>
    %34 = vector.shape_cast %33 : vector<1x256x128xbf16> to vector<256x128xbf16>
    %cst_18 = arith.constant dense<0.000000e+00> : vector<64x128xf32>
    %35 = tpu.matmul %32, %34, %cst_18 {dimension_numbers = #tpu.dot_dimension_numbers<[1], [0], [0], [1], [0, 0, 1, 1], [], []>} : vector<64x256xbf16>, vector<256x128xbf16>, vector<64x128xf32> -> vector<64x128xf32>
    %36 = arith.addf %21, %35 : vector<64x128xf32>
    %37 = arith.truncf %7 : vector<64x128xf32> to vector<64x128xbf16>
    %c63_i32 = arith.constant 63 : i32
    %38 = tpu.dynamic_rotate %7 by %c63_i32 dim 0 : vector<64x128xf32>, i32 -> vector<64x128xf32>
    %c0_19 = arith.constant 0 : index
    %c4 = arith.constant 4 : index
    %39 = vector.load %arg2[%c0_19, %c4] : memref<64x8xf32, #tpu.memory_space<vmem>>, vector<64x1xf32>
    %40 = vector.broadcast %39 : vector<64x1xf32> to vector<64x128xf32>
    %41 = arith.mulf %38, %40 : vector<64x128xf32>
    %42 = arith.truncf %41 : vector<64x128xf32> to vector<64x128xbf16>
    %43 = tpu.concatenate %37, %42 in 1 : vector<64x128xbf16>, vector<64x128xbf16> -> vector<64x256xbf16>
    %c2_20 = arith.constant 2 : index
    %c0_21 = arith.constant 0 : index
    %c0_22 = arith.constant 0 : index
    %44 = vector.load %arg5[%c2_20, %c0_21, %c0_22] : memref<5x256x128xbf16, #tpu.memory_space<vmem>>, vector<1x256x128xbf16>
    %45 = vector.shape_cast %44 : vector<1x256x128xbf16> to vector<256x128xbf16>
    %cst_23 = arith.constant dense<0.000000e+00> : vector<64x128xf32>
    %46 = tpu.matmul %43, %45, %cst_23 {dimension_numbers = #tpu.dot_dimension_numbers<[1], [0], [0], [1], [0, 0, 1, 1], [], []>} : vector<64x256xbf16>, vector<256x128xbf16>, vector<64x128xf32> -> vector<64x128xf32>
    %47 = arith.addf %36, %46 : vector<64x128xf32>
    %c57_i32 = arith.constant 57 : i32
    %48 = tpu.dynamic_rotate %7 by %c57_i32 dim 0 : vector<64x128xf32>, i32 -> vector<64x128xf32>
    %c0_24 = arith.constant 0 : index
    %c5 = arith.constant 5 : index
    %49 = vector.load %arg2[%c0_24, %c5] : memref<64x8xf32, #tpu.memory_space<vmem>>, vector<64x1xf32>
    %50 = vector.broadcast %49 : vector<64x1xf32> to vector<64x128xf32>
    %51 = arith.mulf %48, %50 : vector<64x128xf32>
    %52 = arith.truncf %51 : vector<64x128xf32> to vector<64x128xbf16>
    %c56_i32 = arith.constant 56 : i32
    %53 = tpu.dynamic_rotate %7 by %c56_i32 dim 0 : vector<64x128xf32>, i32 -> vector<64x128xf32>
    %c0_25 = arith.constant 0 : index
    %c6 = arith.constant 6 : index
    %54 = vector.load %arg2[%c0_25, %c6] : memref<64x8xf32, #tpu.memory_space<vmem>>, vector<64x1xf32>
    %55 = vector.broadcast %54 : vector<64x1xf32> to vector<64x128xf32>
    %56 = arith.mulf %53, %55 : vector<64x128xf32>
    %57 = arith.truncf %56 : vector<64x128xf32> to vector<64x128xbf16>
    %58 = tpu.concatenate %52, %57 in 1 : vector<64x128xbf16>, vector<64x128xbf16> -> vector<64x256xbf16>
    %c3_26 = arith.constant 3 : index
    %c0_27 = arith.constant 0 : index
    %c0_28 = arith.constant 0 : index
    %59 = vector.load %arg5[%c3_26, %c0_27, %c0_28] : memref<5x256x128xbf16, #tpu.memory_space<vmem>>, vector<1x256x128xbf16>
    %60 = vector.shape_cast %59 : vector<1x256x128xbf16> to vector<256x128xbf16>
    %cst_29 = arith.constant dense<0.000000e+00> : vector<64x128xf32>
    %61 = tpu.matmul %58, %60, %cst_29 {dimension_numbers = #tpu.dot_dimension_numbers<[1], [0], [0], [1], [0, 0, 1, 1], [], []>} : vector<64x256xbf16>, vector<256x128xbf16>, vector<64x128xf32> -> vector<64x128xf32>
    %62 = arith.addf %47, %61 : vector<64x128xf32>
    %c55_i32 = arith.constant 55 : i32
    %63 = tpu.dynamic_rotate %7 by %c55_i32 dim 0 : vector<64x128xf32>, i32 -> vector<64x128xf32>
    %c0_30 = arith.constant 0 : index
    %c7 = arith.constant 7 : index
    %64 = vector.load %arg2[%c0_30, %c7] : memref<64x8xf32, #tpu.memory_space<vmem>>, vector<64x1xf32>
    %65 = vector.broadcast %64 : vector<64x1xf32> to vector<64x128xf32>
    %66 = arith.mulf %63, %65 : vector<64x128xf32>
    %67 = arith.truncf %66 : vector<64x128xf32> to vector<64x128xbf16>
    %68 = tpu.concatenate %67, %67 in 1 : vector<64x128xbf16>, vector<64x128xbf16> -> vector<64x256xbf16>
    %c4_31 = arith.constant 4 : index
    %c0_32 = arith.constant 0 : index
    %c0_33 = arith.constant 0 : index
    %69 = vector.load %arg5[%c4_31, %c0_32, %c0_33] : memref<5x256x128xbf16, #tpu.memory_space<vmem>>, vector<1x256x128xbf16>
    %70 = vector.shape_cast %69 : vector<1x256x128xbf16> to vector<256x128xbf16>
    %cst_34 = arith.constant dense<0.000000e+00> : vector<64x128xf32>
    %71 = tpu.matmul %68, %70, %cst_34 {dimension_numbers = #tpu.dot_dimension_numbers<[1], [0], [0], [1], [0, 0, 1, 1], [], []>} : vector<64x256xbf16>, vector<256x128xbf16>, vector<64x128xf32> -> vector<64x128xf32>
    %72 = arith.addf %62, %71 : vector<64x128xf32>
    %c0_35 = arith.constant 0 : index
    %c0_36 = arith.constant 0 : index
    %73 = vector.load %arg6[%c0_35, %c0_36] : memref<1x128xf32, #tpu.memory_space<vmem>>, vector<1x128xf32>
    %74 = vector.broadcast %73 : vector<1x128xf32> to vector<64x128xf32>
    %75 = arith.addf %72, %74 : vector<64x128xf32>
    %cst_37 = arith.constant 0.000000e+00 : f32
    %76 = vector.broadcast %cst_37 : f32 to vector<64x128xf32>
    %77 = arith.maximumf %75, %76 : vector<64x128xf32>
    %78 = arith.truncf %77 : vector<64x128xf32> to vector<64x128xbf16>
    %c0_38 = arith.constant 0 : index
    %c0_39 = arith.constant 0 : index
    %79 = vector.load %arg7[%c0_38, %c0_39] : memref<128x128xbf16, #tpu.memory_space<vmem>>, vector<128x128xbf16>
    %cst_40 = arith.constant dense<0.000000e+00> : vector<64x128xf32>
    %80 = tpu.matmul %78, %79, %cst_40 {dimension_numbers = #tpu.dot_dimension_numbers<[1], [0], [0], [1], [0, 0, 1, 1], [], []>} : vector<64x128xbf16>, vector<128x128xbf16>, vector<64x128xf32> -> vector<64x128xf32>
    %c0_41 = arith.constant 0 : index
    %c0_42 = arith.constant 0 : index
    %81 = vector.load %arg8[%c0_41, %c0_42] : memref<1x128xf32, #tpu.memory_space<vmem>>, vector<1x128xf32>
    %82 = vector.broadcast %81 : vector<1x128xf32> to vector<64x128xf32>
    %83 = arith.addf %80, %82 : vector<64x128xf32>
    %c0_43 = arith.constant 0 : index
    %c0_44 = arith.constant 0 : index
    %84 = vector.load %arg1[%c0_43, %c0_44] : memref<64x128xbf16, #tpu.memory_space<vmem>>, vector<64x128xbf16>
    %85 = arith.extf %84 : vector<64x128xbf16> to vector<64x128xf32>
    %86 = arith.addf %83, %85 : vector<64x128xf32>
    %cst_45 = arith.constant 0.000000e+00 : f32
    %87 = vector.broadcast %cst_45 : f32 to vector<64x128xf32>
    %88 = arith.maximumf %86, %87 : vector<64x128xf32>
    %89 = arith.truncf %88 : vector<64x128xf32> to vector<64x128xbf16>
    %c0_46 = arith.constant 0 : index
    %c0_47 = arith.constant 0 : index
    %90 = vector.load %arg9[%c0_46, %c0_47] : memref<64x128xbf16, #tpu.memory_space<vmem>>, vector<64x128xbf16>
    tpu.vector_store %arg9[%c0_46, %c0_47], %89 {strides = array<i32>} : memref<64x128xbf16, #tpu.memory_space<vmem>>, vector<64x128xbf16>,
    return
  }
  func.func @transform_0(%arg0: i32) -> (i32, i32) {
    %c0_i32 = arith.constant 0 : i32
    %c0_i32_0 = arith.constant 0 : i32
    return %arg0, %c0_i32 : i32, i32
  }
  func.func @transform_1(%arg0: i32) -> (i32, i32) {
    %c0_i32 = arith.constant 0 : i32
    %c0_i32_0 = arith.constant 0 : i32
    return %arg0, %c0_i32 : i32, i32
  }
  func.func @transform_2(%arg0: i32) -> (i32, i32) {
    %c0_i32 = arith.constant 0 : i32
    %c0_i32_0 = arith.constant 0 : i32
    %c0_i32_1 = arith.constant 0 : i32
    return %c0_i32, %c0_i32_0 : i32, i32
  }
  func.func @transform_3(%arg0: i32) -> (i32, i32) {
    %c0_i32 = arith.constant 0 : i32
    %c0_i32_0 = arith.constant 0 : i32
    %c0_i32_1 = arith.constant 0 : i32
    return %c0_i32, %c0_i32_0 : i32, i32
  }
  func.func @transform_4(%arg0: i32) -> (i32, i32, i32) {
    %c0_i32 = arith.constant 0 : i32
    %c0_i32_0 = arith.constant 0 : i32
    %c0_i32_1 = arith.constant 0 : i32
    %c0_i32_2 = arith.constant 0 : i32
    return %c0_i32, %c0_i32_0, %c0_i32_1 : i32, i32, i32
  }
  func.func @transform_5(%arg0: i32) -> (i32, i32) {
    %c0_i32 = arith.constant 0 : i32
    %c0_i32_0 = arith.constant 0 : i32
    %c0_i32_1 = arith.constant 0 : i32
    return %c0_i32, %c0_i32_0 : i32, i32
  }
  func.func @transform_6(%arg0: i32) -> (i32, i32) {
    %c0_i32 = arith.constant 0 : i32
    %c0_i32_0 = arith.constant 0 : i32
    %c0_i32_1 = arith.constant 0 : i32
    return %c0_i32, %c0_i32_0 : i32, i32
  }
  func.func @transform_7(%arg0: i32) -> (i32, i32) {
    %c0_i32 = arith.constant 0 : i32
    %c0_i32_0 = arith.constant 0 : i32
    %c0_i32_1 = arith.constant 0 : i32
    return %c0_i32, %c0_i32_0 : i32, i32
  }
  func.func @transform_8(%arg0: i32) -> (i32, i32) {
    %c0_i32 = arith.constant 0 : i32
    %c0_i32_0 = arith.constant 0 : i32
    return %arg0, %c0_i32 : i32, i32
  }
}

</mosaic_0001>

<llo_original>
// kernel: bottleneck_pallas.1
$region0: #{bottleneck_pallas.1}
  #allocation0 [shape = 'u32[]', space=smem, size = 0x4, offset = 0x4, fixed_abs, tag = 'smem constant byte address 0x4 - core index']
  #allocation1 [shape = 'u32[144,128]{1,0:T(1,128)}', space=vmem, size = 0x12000, scoped, tag = 'internal scratch']
  %s0 = inlined_call_operand.vmem [shape: bf16[128,128], index: 0, kind: input, shape index: {}]
  %s1 = inlined_call_operand.vmem [shape: f32[128,8], index: 1, kind: input, shape index: {}]
  %s2 = inlined_call_operand.vmem [shape: bf16[128,128], index: 2, kind: input, shape index: {}]
  %s3 = inlined_call_operand.vmem [shape: f32[1,128], index: 3, kind: input, shape index: {}]
  %s4 = inlined_call_operand.vmem [shape: bf16[5,256,128], index: 4, kind: input, shape index: {}]
  %s5 = inlined_call_operand.vmem [shape: f32[1,128], index: 5, kind: input, shape index: {}]
  %s6 = inlined_call_operand.vmem [shape: bf16[128,128], index: 6, kind: input, shape index: {}]
  %s7 = inlined_call_operand.vmem [shape: f32[1,128], index: 7, kind: input, shape index: {}]
  %s8 = inlined_call_operand.vmem [shape: bf16[128,128], index: 8, kind: output, shape index: {}]
  %s9 = sld [smem:[#allocation0]]
  $region65: #{bottleneck_pallas.1} parent=0
    _
  %s11 = ssub.s32 1, %s9
  %s12 = scalar_select 0, %s11, %s9
  loop: start=0, step=1, limit=4
  $region2: #{bottleneck_pallas.1} parent=0 // loop_pre_header
    _
  $region3: #{bottleneck_pallas.1} parent=0 // loop_header
    %s14 = sphi 0, %s18
    %p15 = scmp.ge.s32.totalorder %s14, 4
    %s24 = sphi 0, %s26
    %s27 = sphi 0, %s24
    %s28 = sphi 0, %s27
    %s44 = sphi 0, %s28
    %s50 = sphi 0, %s52
    %s53 = sphi 0, %s50
    %s54 = sphi 0, %s53
    %s70 = sphi 0, %s54
    %s74 = sphi 0, %s74
    %s76 = sphi 0, %s74
    %s77 = sphi 0, %s76
    %s91 = sphi 0, %s77
    %s95 = sphi 0, %s95
    %s97 = sphi 0, %s95
    %s98 = sphi 0, %s97
    %s112 = sphi 0, %s98
    %s116 = sphi 0, %s116
    %s118 = sphi 0, %s116
    %s119 = sphi 0, %s118
    %s133 = sphi 0, %s119
    %s137 = sphi 0, %s137
    %s139 = sphi 0, %s137
    %s140 = sphi 0, %s139
    %s154 = sphi 0, %s140
    %s158 = sphi 0, %s158
    %s160 = sphi 0, %s158
    %s161 = sphi 0, %s160
    %s175 = sphi 0, %s161
    %s179 = sphi 0, %s179
    %s181 = sphi 0, %s179
    %s182 = sphi 0, %s181
    %s196 = sphi 0, %s182
    %s202 = sphi 0, %s204
    %s205 = sphi 0, %s202
    %s206 = sphi 0, %s205
    %s222 = sphi 0, %s206
  $region4: #{bottleneck_pallas.1} parent=0 // loop_header_branch
    %17 = sbr.rel (%p15) target = $region8
  $region5: #{bottleneck_pallas.1} parent=0 // loop_body
    %s19 = ssub.s32 %s14, 1
    %s20 = ssub.s32 %s14, 2
    %s21 = sadd.s32 %s14, 1
    %s22 = ssub.s32 %s14, %s21
    %p23 = scmp.eq.s32.totalorder %s22, 0
    %s25 = sadd.s32 %s24, 1
    %s26 = scalar_select %p23, %s24, %s25
    %p29 = pneg %p23
    %p30 = scmp.eq.s32.totalorder %s14, 1
    %p31 = por %p29, %p30
    %p32 = scmp.ne.s32.totalorder %s24, %s27
    %p33 = scmp.eq.s32.totalorder %s14, 0
    %p34 = por %p32, %p33
    %p35 = scmp.ne.s32.totalorder %s24, %s27
    %p36 = scmp.eq.s32.totalorder %s19, 1
    %p37 = por %p35, %p36
    %p38 = scmp.ne.s32.totalorder %s27, %s28
    %p39 = scmp.eq.s32.totalorder %s19, 0
    %p40 = por %p38, %p39
    %p41 = scmp.ne.s32.totalorder %s27, %s28
    %p42 = scmp.eq.s32.totalorder %s20, 1
    %p43 = por %p41, %p42
    %p45 = scmp.ne.s32.totalorder %s28, %s44
    %p46 = scmp.eq.s32.totalorder %s20, 0
    %p47 = por %p45, %p46
    %s48 = ssub.s32 %s14, %s21
    %p49 = scmp.eq.s32.totalorder %s48, 0
    %s51 = sadd.s32 %s50, 1
    %s52 = scalar_select %p49, %s50, %s51
    %p55 = pneg %p49
    %p56 = scmp.eq.s32.totalorder %s14, 1
    %p57 = por %p55, %p56
    %p58 = scmp.ne.s32.totalorder %s50, %s53
    %p59 = scmp.eq.s32.totalorder %s14, 0
    %p60 = por %p58, %p59
    %p61 = scmp.ne.s32.totalorder %s50, %s53
    %p62 = scmp.eq.s32.totalorder %s19, 1
    %p63 = por %p61, %p62
    %p64 = scmp.ne.s32.totalorder %s53, %s54
    %p65 = scmp.eq.s32.totalorder %s19, 0
    %p66 = por %p64, %p65
    %p67 = scmp.ne.s32.totalorder %s53, %s54
    %p68 = scmp.eq.s32.totalorder %s20, 1
    %p69 = por %p67, %p68
    %p71 = scmp.ne.s32.totalorder %s54, %s70
    %p72 = scmp.eq.s32.totalorder %s20, 0
    %p73 = por %p71, %p72
    %s75 = sadd.s32 %s74, 1
    %p78 = scmp.eq.s32.totalorder %s14, 1
    %p79 = scmp.ne.s32.totalorder %s74, %s76
    %p80 = scmp.eq.s32.totalorder %s14, 0
    %p81 = por %p79, %p80
    %p82 = scmp.ne.s32.totalorder %s74, %s76
    %p83 = scmp.eq.s32.totalorder %s19, 1
    %p84 = por %p82, %p83
    %p85 = scmp.ne.s32.totalorder %s76, %s77
    %p86 = scmp.eq.s32.totalorder %s19, 0
    %p87 = por %p85, %p86
    %p88 = scmp.ne.s32.totalorder %s76, %s77
    %p89 = scmp.eq.s32.totalorder %s20, 1
    %p90 = por %p88, %p89
    %p92 = scmp.ne.s32.totalorder %s77, %s91
    %p93 = scmp.eq.s32.totalorder %s20, 0
    %p94 = por %p92, %p93
    %s96 = sadd.s32 %s95, 1
    %p99 = scmp.eq.s32.totalorder %s14, 1
    %p100 = scmp.ne.s32.totalorder %s95, %s97
    %p101 = scmp.eq.s32.totalorder %s14, 0
    %p102 = por %p100, %p101
    %p103 = scmp.ne.s32.totalorder %s95, %s97
    %p104 = scmp.eq.s32.totalorder %s19, 1
    %p105 = por %p103, %p104
    %p106 = scmp.ne.s32.totalorder %s97, %s98
    %p107 = scmp.eq.s32.totalorder %s19, 0
    %p108 = por %p106, %p107
    %p109 = scmp.ne.s32.totalorder %s97, %s98
    %p110 = scmp.eq.s32.totalorder %s20, 1
    %p111 = por %p109, %p110
    %p113 = scmp.ne.s32.totalorder %s98, %s112
    %p114 = scmp.eq.s32.totalorder %s20, 0
    %p115 = por %p113, %p114
    %s117 = sadd.s32 %s116, 1
    %p120 = scmp.eq.s32.totalorder %s14, 1
    %p121 = scmp.ne.s32.totalorder %s116, %s118
    %p122 = scmp.eq.s32.totalorder %s14, 0
    %p123 = por %p121, %p122
    %p124 = scmp.ne.s32.totalorder %s116, %s118
    %p125 = scmp.eq.s32.totalorder %s19, 1
    %p126 = por %p124, %p125
    %p127 = scmp.ne.s32.totalorder %s118, %s119
    %p128 = scmp.eq.s32.totalorder %s19, 0
    %p129 = por %p127, %p128
    %p130 = scmp.ne.s32.totalorder %s118, %s119
    %p131 = scmp.eq.s32.totalorder %s20, 1
    %p132 = por %p130, %p131
    %p134 = scmp.ne.s32.totalorder %s119, %s133
    %p135 = scmp.eq.s32.totalorder %s20, 0
    %p136 = por %p134, %p135
    %s138 = sadd.s32 %s137, 1
    %p141 = scmp.eq.s32.totalorder %s14, 1
    %p142 = scmp.ne.s32.totalorder %s137, %s139
    %p143 = scmp.eq.s32.totalorder %s14, 0
    %p144 = por %p142, %p143
    %p145 = scmp.ne.s32.totalorder %s137, %s139
    %p146 = scmp.eq.s32.totalorder %s19, 1
    %p147 = por %p145, %p146
    %p148 = scmp.ne.s32.totalorder %s139, %s140
    %p149 = scmp.eq.s32.totalorder %s19, 0
    %p150 = por %p148, %p149
    %p151 = scmp.ne.s32.totalorder %s139, %s140
    %p152 = scmp.eq.s32.totalorder %s20, 1
    %p153 = por %p151, %p152
    %p155 = scmp.ne.s32.totalorder %s140, %s154
    %p156 = scmp.eq.s32.totalorder %s20, 0
    %p157 = por %p155, %p156
    %s159 = sadd.s32 %s158, 1
    %p162 = scmp.eq.s32.totalorder %s14, 1
    %p163 = scmp.ne.s32.totalorder %s158, %s160
    %p164 = scmp.eq.s32.totalorder %s14, 0
    %p165 = por %p163, %p164
    %p166 = scmp.ne.s32.totalorder %s158, %s160
    %p167 = scmp.eq.s32.totalorder %s19, 1
    %p168 = por %p166, %p167
    %p169 = scmp.ne.s32.totalorder %s160, %s161
    %p170 = scmp.eq.s32.totalorder %s19, 0
    %p171 = por %p169, %p170
    %p172 = scmp.ne.s32.totalorder %s160, %s161
    %p173 = scmp.eq.s32.totalorder %s20, 1
    %p174 = por %p172, %p173
    %p176 = scmp.ne.s32.totalorder %s161, %s175
    %p177 = scmp.eq.s32.totalorder %s20, 0
    %p178 = por %p176, %p177
    %s180 = sadd.s32 %s179, 1
    %p183 = scmp.eq.s32.totalorder %s14, 1
    %p184 = scmp.ne.s32.totalorder %s179, %s181
    %p185 = scmp.eq.s32.totalorder %s14, 0
    %p186 = por %p184, %p185
    %p187 = scmp.ne.s32.totalorder %s179, %s181
    %p188 = scmp.eq.s32.totalorder %s19, 1
    %p189 = por %p187, %p188
    %p190 = scmp.ne.s32.totalorder %s181, %s182
    %p191 = scmp.eq.s32.totalorder %s19, 0
    %p192 = por %p190, %p191
    %p193 = scmp.ne.s32.totalorder %s181, %s182
    %p194 = scmp.eq.s32.totalorder %s20, 1
    %p195 = por %p193, %p194
    %p197 = scmp.ne.s32.totalorder %s182, %s196
    %p198 = scmp.eq.s32.totalorder %s20, 0
    %p199 = por %p197, %p198
    %s200 = ssub.s32 %s14, %s21
    %p201 = scmp.eq.s32.totalorder %s200, 0
    %s203 = sadd.s32 %s202, 1
    %s204 = scalar_select %p201, %s202, %s203
    %p207 = pneg %p201
    %p208 = scmp.eq.s32.totalorder %s14, 1
    %p209 = por %p207, %p208
    %p210 = scmp.ne.s32.totalorder %s202, %s205
    %p211 = scmp.eq.s32.totalorder %s14, 0
    %p212 = por %p210, %p211
    %p213 = scmp.ne.s32.totalorder %s202, %s205
    %p214 = scmp.eq.s32.totalorder %s19, 1
    %p215 = por %p213, %p214
    %p216 = scmp.ne.s32.totalorder %s205, %s206
    %p217 = scmp.eq.s32.totalorder %s19, 0
    %p218 = por %p216, %p217
    %p219 = scmp.ne.s32.totalorder %s205, %s206
    %p220 = scmp.eq.s32.totalorder %s20, 1
    %p221 = por %p219, %p220
    %p223 = scmp.ne.s32.totalorder %s206, %s222
    %p224 = scmp.eq.s32.totalorder %s20, 0
    %p225 = por %p223, %p224
    %p226 = scmp.le.s32.totalorder 1, %s14
    %p227 = scmp.lt.s32.totalorder %s14, 3
    %p228 = pnand %p226, %p227
    %p229 = pneg %p228
    // Predicated region
    $region9: #{bottleneck_pallas.1} parent=5 // pred_check
      _
    $region10: #{bottleneck_pallas.1} parent=5 // pred_check_branch
      %231 = sbr.rel (%p228) target = $region12
    $region11: #{bottleneck_pallas.1} parent=5 // pred_region
      %s232 = ssub.s32 %s14, 1
      // Predicated region
      $region13: #{bottleneck_pallas.1} parent=11 // pred_check
        %p233 = pneg %p87
      $region14: #{bottleneck_pallas.1} parent=11 // pred_check_branch
        %235 = sbr.rel (%p233) target = $region16
      $region15: #{bottleneck_pallas.1} parent=11 // pred_region
        _
      $region16: #{bottleneck_pallas.1} parent=11 // pred_fallthru
        _
      // Predicated region
      $region17: #{bottleneck_pallas.1} parent=11 // pred_check
        %p236 = pneg %p108
      $region18: #{bottleneck_pallas.1} parent=11 // pred_check_branch
        %238 = sbr.rel (%p236) target = $region20
      $region19: #{bottleneck_pallas.1} parent=11 // pred_region
        _
      $region20: #{bottleneck_pallas.1} parent=11 // pred_fallthru
        _
      // Predicated region
      $region21: #{bottleneck_pallas.1} parent=11 // pred_check
        %p239 = pneg %p129
      $region22: #{bottleneck_pallas.1} parent=11 // pred_check_branch
        %241 = sbr.rel (%p239) target = $region24
      $region23: #{bottleneck_pallas.1} parent=11 // pred_region
        _
      $region24: #{bottleneck_pallas.1} parent=11 // pred_fallthru
        _
      // Predicated region
      $region25: #{bottleneck_pallas.1} parent=11 // pred_check
        %p242 = pneg %p150
      $region26: #{bottleneck_pallas.1} parent=11 // pred_check_branch
        %244 = sbr.rel (%p242) target = $region28
      $region27: #{bottleneck_pallas.1} parent=11 // pred_region
        _
      $region28: #{bottleneck_pallas.1} parent=11 // pred_fallthru
        _
      // Predicated region
      $region29: #{bottleneck_pallas.1} parent=11 // pred_check
        %p245 = pneg %p171
      $region30: #{bottleneck_pallas.1} parent=11 // pred_check_branch
        %247 = sbr.rel (%p245) target = $region32
      $region31: #{bottleneck_pallas.1} parent=11 // pred_region
        _
      $region32: #{bottleneck_pallas.1} parent=11 // pred_fallthru
        _
      // Predicated region
      $region33: #{bottleneck_pallas.1} parent=11 // pred_check
        %p248 = pneg %p192
      $region34: #{bottleneck_pallas.1} parent=11 // pred_check_branch
        %250 = sbr.rel (%p248) target = $region36
      $region35: #{bottleneck_pallas.1} parent=11 // pred_region
        _
      $region36: #{bottleneck_pallas.1} parent=11 // pred_fallthru
        _
    $region12: #{bottleneck_pallas.1} parent=5 // pred_fallthru
      _
    %p251 = scmp.lt.s32.totalorder %s14, 2
    // Predicated region
    $region37: #{bottleneck_pallas.1} parent=5 // pred_check
      %p252 = pneg %p251
    $region38: #{bottleneck_pallas.1} parent=5 // pred_check_branch
      %254 = sbr.rel (%p252) target = $region40
    $region39: #{bottleneck_pallas.1} parent=5 // pred_region
      // Predicated region
      $region41: #{bottleneck_pallas.1} parent=39 // pred_check
        %p255 = pneg %p34
      $region42: #{bottleneck_pallas.1} parent=39 // pred_check_branch
        %257 = sbr.rel (%p255) target = $region44
      $region43: #{bottleneck_pallas.1} parent=39 // pred_region
        %s258 = smul.u32 8, %s14
        %p259 = scmp.lt.s32.totalorder %s258, 15
        %s260 = scalar_select %p259, %s258, 15
        %s261 = smul.addr %s260, 4
        %s262 = scalar_lea.vmem %s0, %s261
        %s263 = smul.u32 8, %s14
      $region44: #{bottleneck_pallas.1} parent=39 // pred_fallthru
        _
      // Predicated region
      $region45: #{bottleneck_pallas.1} parent=39 // pred_check
        %p264 = pneg %p60
      $region46: #{bottleneck_pallas.1} parent=39 // pred_check_branch
        %266 = sbr.rel (%p264) target = $region48
      $region47: #{bottleneck_pallas.1} parent=39 // pred_region
        %s267 = smul.u32 8, %s14
        %p268 = scmp.lt.s32.totalorder %s267, 15
        %s269 = scalar_select %p268, %s267, 15
        %s270 = smul.addr %s269, 8
        %s271 = scalar_lea.vmem %s1, %s270
        %s272 = smul.u32 8, %s14
      $region48: #{bottleneck_pallas.1} parent=39 // pred_fallthru
        _
    $region40: #{bottleneck_pallas.1} parent=5 // pred_fallthru
      _
    %p273 = scmp.le.s32.totalorder 1, %s14
    %p274 = scmp.lt.s32.totalorder %s14, 3
    %p275 = pnand %p273, %p274
    %p276 = pneg %p275
    // Predicated region
    $region49: #{bottleneck_pallas.1} parent=5 // pred_check
      _
    $region50: #{bottleneck_pallas.1} parent=5 // pred_check_branch
      %278 = sbr.rel (%p275) target = $region52
    $region51: #{bottleneck_pallas.1} parent=5 // pred_region
      %s279 = ssub.s32 %s14, 1
      %s280 = smul.u32 8, %s19
      %p281 = scmp.lt.s32.totalorder %s280, 15
      %s282 = scalar_select %p281, %s280, 15
      %s283 = smul.addr %s282, 4
      %s284 = scalar_lea.vmem %s0, %s283
      %p285 = pneg %p40
      %p286 = pneg %p37
      %s287 = smul.u32 8, %s19
      %p288 = scmp.lt.s32.totalorder %s287, 15
      %s289 = scalar_select %p288, %s287, 15
      %s290 = smul.addr %s289, 8
      %s291 = scalar_lea.vmem %s1, %s290
      %p292 = pneg %p66
      %p293 = pneg %p63
      %p294 = pneg %p87
      %p295 = pneg %p84
      %p296 = pneg %p108
      %p297 = pneg %p105
      %p298 = pneg %p129
      %p299 = pneg %p126
      %p300 = pneg %p150
      %p301 = pneg %p147
      %p302 = pneg %p171
      %p303 = pneg %p168
      %p304 = pneg %p192
      %p305 = pneg %p189
      %p306 = pneg %p218
      %p307 = pneg %p215
      %s308 = smul.u32 8, %s19
      %p309 = scmp.lt.s32.totalorder %s308, 15
      %s310 = scalar_select %p309, %s308, 15
      %s311 = smul.addr %s310, 4
      %s312 = scalar_lea.vmem %s8, %s311
      %s313 = smul.u32 8, %s19
      %p314 = scmp.lt.s32.totalorder %s313, 15
      %s315 = scalar_select %p314, %s313, 15
      %s316 = smul.addr %s315, 4
      %s317 = scalar_lea.vmem %s0, %s316
      %s318 = smul.u32 8, %s19
      %s319 = smul.u32 8, %s19
      %p320 = scmp.lt.s32.totalorder %s319, 15
      %s321 = scalar_select %p320, %s319, 15
      %s322 = smul.addr %s321, 8
      %s323 = scalar_lea.vmem %s1, %s322
      %s324 = smul.u32 8, %s19
      %s325 = smul.u32 8, %s19
      %p326 = scmp.lt.s32.totalorder %s325, 15
      %s327 = scalar_select %p326, %s325, 15
      %s328 = smul.addr %s327, 4
      %s329 = scalar_lea.vmem %s8, %s328
      %s330 = smul.u32 8, %s19
      %v332 = vld [vmem:[%s317] sm:$0xf]
      %v333 = vld [vmem:[%s317 + $0x4] sm:$0xf]
      %v334 = vld [vmem:[%s317 + $0x8] sm:$0xf]
      %v335 = vld [vmem:[%s317 + $0xc] sm:$0xf]
      %v336 = vld [vmem:[%s317 + $0x10] sm:$0xf]
      %v337 = vld [vmem:[%s317 + $0x14] sm:$0xf]
      %v338 = vld [vmem:[%s317 + $0x18] sm:$0xf]
      %v339 = vld [vmem:[%s317 + $0x1c] sm:$0xf]
      %v340 = vld [vmem:[%s2] sm:$0xf]
      %v341 = vld [vmem:[%s2 + $0x4] sm:$0xf]
      %v342 = vld [vmem:[%s2 + $0x8] sm:$0xf]
      %v343 = vld [vmem:[%s2 + $0xc] sm:$0xf]
      %v344 = vld [vmem:[%s2 + $0x10] sm:$0xf]
      %v345 = vld [vmem:[%s2 + $0x14] sm:$0xf]
      %v346 = vld [vmem:[%s2 + $0x18] sm:$0xf]
      %v347 = vld [vmem:[%s2 + $0x1c] sm:$0xf]
      %v348 = vld [vmem:[%s2 + $0x20] sm:$0xf]
      %v349 = vld [vmem:[%s2 + $0x24] sm:$0xf]
      %v350 = vld [vmem:[%s2 + $0x28] sm:$0xf]
      %v351 = vld [vmem:[%s2 + $0x2c] sm:$0xf]
      %v352 = vld [vmem:[%s2 + $0x30] sm:$0xf]
      %v353 = vld [vmem:[%s2 + $0x34] sm:$0xf]
      %v354 = vld [vmem:[%s2 + $0x38] sm:$0xf]
      %v355 = vld [vmem:[%s2 + $0x3c] sm:$0xf]
      %v356 = vld [vmem:[%s3] sm:$0x1]
      %v358 = vlaneseq
      %v359 = vshrl.u32 %v358, 7
      %v360 = vsub.s32 0, %v359
      %v361 = vrot.slane %v356, %v360
      %v371 = vunpack.c.l.b16 %v332
      %v372 = vunpack.c.l.b16 %v333
      %v373 = vunpack.c.l.b16 %v334
      %v374 = vunpack.c.l.b16 %v335
      %v375 = vunpack.c.l.b16 %v336
      %v376 = vunpack.c.l.b16 %v337
      %v377 = vunpack.c.l.b16 %v338
      %v378 = vunpack.c.l.b16 %v339
      %v379 = vpack.c.b16 %v372, %v371
      %v380 = vpack.c.b16 %v374, %v373
      %v381 = vpack.c.b16 %v376, %v375
      %v382 = vpack.c.b16 %v378, %v377
      %v403 = vunpack.c.l.b16 %v340
      %v404 = vunpack.c.l.b16 %v341
      %v405 = vunpack.c.l.b16 %v342
      %v406 = vunpack.c.l.b16 %v343
      %v407 = vunpack.c.l.b16 %v344
      %v408 = vunpack.c.l.b16 %v345
      %v409 = vunpack.c.l.b16 %v346
      %v410 = vunpack.c.l.b16 %v347
      %v411 = vunpack.c.l.b16 %v348
      %v412 = vunpack.c.l.b16 %v349
      %v413 = vunpack.c.l.b16 %v350
      %v414 = vunpack.c.l.b16 %v351
      %v415 = vunpack.c.l.b16 %v352
      %v416 = vunpack.c.l.b16 %v353
      %v417 = vunpack.c.l.b16 %v354
      %v418 = vunpack.c.l.b16 %v355
      %v419 = vpack.c.b16 %v404, %v403
      %v420 = vpack.c.b16 %v406, %v405
      %v421 = vpack.c.b16 %v408, %v407
      %v422 = vpack.c.b16 %v410, %v409
      %v423 = vpack.c.b16 %v412, %v411
      %v424 = vpack.c.b16 %v414, %v413
      %v425 = vpack.c.b16 %v416, %v415
      %v426 = vpack.c.b16 %v418, %v417
      %435 = vmatprep.subr.bf16.mxu0 0
      %436 = vmatpush1.bf16.msra.mxu0 %v419
      %437 = vmatprep.subr.bf16.mxu0 0
      %438 = vmatpush1.bf16.msra.mxu0 %v420
      %439 = vmatprep.subr.bf16.mxu0 0
      %440 = vmatpush1.bf16.msra.mxu0 %v421
      %441 = vmatprep.subr.bf16.mxu0 0
      %442 = vmatpush1.bf16.msra.mxu0 %v422
      %443 = vmatprep.subr.bf16.mxu0 0
      %444 = vmatpush1.bf16.msra.mxu0 %v423
      %445 = vmatprep.subr.bf16.mxu0 0
      %446 = vmatpush1.bf16.msra.mxu0 %v424
      %447 = vmatprep.subr.bf16.mxu0 0
      %448 = vmatpush1.bf16.msra.mxu0 %v425
      %449 = vmatprep.subr.bf16.mxu0 0
      %450 = vmatpush1.bf16.msra.mxu0 %v426
      %451 = vmatprep.subr.bf16.mxu0 0
      %452 = vmatpush1.bf16.msra.mxu0 0
      %453 = vmatprep.subr.bf16.mxu0 0
      %454 = vmatpush1.bf16.msra.mxu0 0
      %455 = vmatprep.subr.bf16.mxu0 0
      %456 = vmatpush1.bf16.msra.mxu0 0
      %457 = vmatprep.subr.bf16.mxu0 0
      %458 = vmatpush1.bf16.msra.mxu0 0
      %459 = vmatprep.subr.bf16.mxu0 0
      %460 = vmatpush1.bf16.msra.mxu0 0
      %461 = vmatprep.subr.bf16.mxu0 0
      %462 = vmatpush1.bf16.msra.mxu0 0
      %463 = vmatprep.subr.bf16.mxu0 0
      %464 = vmatpush1.bf16.msra.mxu0 0
      %465 = vmatprep.subr.bf16.mxu0 0
      %466 = vmatpush1.bf16.msra.mxu0 0
      %467 = vmatprep.mubr.bf16.mxu0 0
      %468 = vmatmul.mubr.bf16.gmra.mrb[0].mxu0 %v379
      %v469 = vpop.f32.mrb[0].mxu0
      %v470 = vadd.f32 %v361, %v469
      %v471 = vpop.f32.mrb[0].mxu0
      %v472 = vpop.f32.mrb[0].mxu0
      %v473 = vadd.f32 %v361, %v472
      %v474 = vpop.f32.mrb[0].mxu0
      %475 = vmatprep.mubr.bf16.mxu0 0
      %476 = vmatmul.mubr.bf16.gmra.mrb[0].mxu0 %v380
      %v477 = vpop.f32.mrb[0].mxu0
      %v478 = vadd.f32 %v361, %v477
      %v479 = vpop.f32.mrb[0].mxu0
      %v480 = vpop.f32.mrb[0].mxu0
      %v481 = vadd.f32 %v361, %v480
      %v482 = vpop.f32.mrb[0].mxu0
      %483 = vmatprep.mubr.bf16.mxu0 0
      %484 = vmatmul.mubr.bf16.gmra.mrb[0].mxu0 %v381
      %v485 = vpop.f32.mrb[0].mxu0
      %v486 = vadd.f32 %v361, %v485
      %v487 = vpop.f32.mrb[0].mxu0
      %v488 = vpop.f32.mrb[0].mxu0
      %v489 = vadd.f32 %v361, %v488
      %v490 = vpop.f32.mrb[0].mxu0
      %491 = vmatprep.mubr.bf16.mxu0 0
      %492 = vmatmul.mubr.bf16.gmra.mrb[0].mxu0 %v382
      %v493 = vpop.f32.mrb[0].mxu0
      %v494 = vadd.f32 %v361, %v493
      %v495 = vpop.f32.mrb[0].mxu0
      %v496 = vpop.f32.mrb[0].mxu0
      %v497 = vadd.f32 %v361, %v496
      %v498 = vpop.f32.mrb[0].mxu0
      %499 = vdwg.mxu0
      %v500 = vmax.f32 %v470, 0.0
      %v501 = vmax.f32 %v473, 0.0
      %v502 = vmax.f32 %v478, 0.0
      %v503 = vmax.f32 %v481, 0.0
      %v504 = vmax.f32 %v486, 0.0
      %v505 = vmax.f32 %v489, 0.0
      %v506 = vmax.f32 %v494, 0.0
      %v507 = vmax.f32 %v497, 0.0
      %v508 = vrot.slane %v500, 7
      %v509 = vrot.slane %v501, 7
      %v510 = vrot.slane %v502, 7
      %v511 = vrot.slane %v503, 7
      %v512 = vrot.slane %v504, 7
      %v513 = vrot.slane %v505, 7
      %v514 = vrot.slane %v506, 7
      %v515 = vrot.slane %v507, 7
      %v516 = vlaneseq
      %v517 = vshrl.u32 %v516, 7
      %vm518 = vcmp.lt.s32.totalorder %v517, 1
      %v519 = vsel %vm518, %v514, %v515
      %v520 = vsel %vm518, %v513, %v514
      %v521 = vsel %vm518, %v512, %v513
      %v522 = vsel %vm518, %v511, %v512
      %v523 = vsel %vm518, %v510, %v511
      %v524 = vsel %vm518, %v509, %v510
      %v525 = vsel %vm518, %v508, %v509
      %v526 = vsel %vm518, %v515, %v508
      %v527 = vld [vmem:[%s323] sm:$0xff]
      %v528 = vld [vmem:[%s323 + $0x8] sm:$0xff]
      %v529 = vld [vmem:[%s323 + $0x10] sm:$0xff]
      %v530 = vld [vmem:[%s323 + $0x18] sm:$0xff]
      %v531 = vld [vmem:[%s323 + $0x20] sm:$0xff]
      %v532 = vld [vmem:[%s323 + $0x28] sm:$0xff]
      %v533 = vld [vmem:[%s323 + $0x30] sm:$0xff]
      %v534 = vld [vmem:[%s323 + $0x38] sm:$0xff]
      %536 = vset.pattern.permute.xlu0 0
      %537 = vperm.xlu0 %536, %v527
      %v538 = vpop.permute.xlu0 %537
      %541 = vset.pattern.permute.xlu0 0
      %542 = vperm.xlu0 %541, %v528
      %v543 = vpop.permute.xlu0 %542
      %546 = vset.pattern.permute.xlu0 0
      %547 = vperm.xlu0 %546, %v529
      %v548 = vpop.permute.xlu0 %547
      %551 = vset.pattern.permute.xlu0 0
      %552 = vperm.xlu0 %551, %v530
      %v553 = vpop.permute.xlu0 %552
      %556 = vset.pattern.permute.xlu0 0
      %557 = vperm.xlu0 %556, %v531
      %v558 = vpop.permute.xlu0 %557
      %561 = vset.pattern.permute.xlu0 0
      %562 = vperm.xlu0 %561, %v532
      %v563 = vpop.permute.xlu0 %562
      %566 = vset.pattern.permute.xlu0 0
      %567 = vperm.xlu0 %566, %v533
      %v568 = vpop.permute.xlu0 %567
      %571 = vset.pattern.permute.xlu0 0
      %572 = vperm.xlu0 %571, %v534
      %v573 = vpop.permute.xlu0 %572
      %v575 = vmul.f32 %v519, %v538
      %v576 = vmul.f32 %v526, %v543
      %v577 = vmul.f32 %v525, %v548
      %v578 = vmul.f32 %v524, %v553
      %v579 = vmul.f32 %v523, %v558
      %v580 = vmul.f32 %v522, %v563
      %v581 = vmul.f32 %v521, %v568
      %v582 = vmul.f32 %v520, %v573
      %v583 = vpack.c.bf16 %v576, %v575
      %v584 = vpack.c.bf16 %v578, %v577
      %v585 = vpack.c.bf16 %v580, %v579
      %v586 = vpack.c.bf16 %v582, %v581
      %587 = vset.pattern.permute.xlu0 1
      %588 = vperm.xlu0 %587, %v527
      %v589 = vpop.permute.xlu0 %588
      %591 = vset.pattern.permute.xlu0 1
      %592 = vperm.xlu0 %591, %v528
      %v593 = vpop.permute.xlu0 %592
      %595 = vset.pattern.permute.xlu0 1
      %596 = vperm.xlu0 %595, %v529
      %v597 = vpop.permute.xlu0 %596
      %599 = vset.pattern.permute.xlu0 1
      %600 = vperm.xlu0 %599, %v530
      %v601 = vpop.permute.xlu0 %600
      %603 = vset.pattern.permute.xlu0 1
      %604 = vperm.xlu0 %603, %v531
      %v605 = vpop.permute.xlu0 %604
      %607 = vset.pattern.permute.xlu0 1
      %608 = vperm.xlu0 %607, %v532
      %v609 = vpop.permute.xlu0 %608
      %611 = vset.pattern.permute.xlu0 1
      %612 = vperm.xlu0 %611, %v533
      %v613 = vpop.permute.xlu0 %612
      %615 = vset.pattern.permute.xlu0 1
      %616 = vperm.xlu0 %615, %v534
      %v617 = vpop.permute.xlu0 %616
      %v619 = vmul.f32 %v507, %v589
      %v620 = vmul.f32 %v500, %v593
      %v621 = vmul.f32 %v501, %v597
      %v622 = vmul.f32 %v502, %v601
      %v623 = vmul.f32 %v503, %v605
      %v624 = vmul.f32 %v504, %v609
      %v625 = vmul.f32 %v505, %v613
      %v626 = vmul.f32 %v506, %v617
      %v627 = vpack.c.bf16 %v620, %v619
      %v628 = vpack.c.bf16 %v622, %v621
      %v629 = vpack.c.bf16 %v624, %v623
      %v630 = vpack.c.bf16 %v626, %v625
      %v631 = vld [vmem:[%s4] sm:$0xf]
      %v632 = vld [vmem:[%s4 + $0x4] sm:$0xf]
      %v633 = vld [vmem:[%s4 + $0x8] sm:$0xf]
      %v634 = vld [vmem:[%s4 + $0xc] sm:$0xf]
      %v635 = vld [vmem:[%s4 + $0x10] sm:$0xf]
      %v636 = vld [vmem:[%s4 + $0x14] sm:$0xf]
      %v637 = vld [vmem:[%s4 + $0x18] sm:$0xf]
      %v638 = vld [vmem:[%s4 + $0x1c] sm:$0xf]
      %v639 = vld [vmem:[%s4 + $0x20] sm:$0xf]
      %v640 = vld [vmem:[%s4 + $0x24] sm:$0xf]
      %v641 = vld [vmem:[%s4 + $0x28] sm:$0xf]
      %v642 = vld [vmem:[%s4 + $0x2c] sm:$0xf]
      %v643 = vld [vmem:[%s4 + $0x30] sm:$0xf]
      %v644 = vld [vmem:[%s4 + $0x34] sm:$0xf]
      %v645 = vld [vmem:[%s4 + $0x38] sm:$0xf]
      %v646 = vld [vmem:[%s4 + $0x3c] sm:$0xf]
      %v647 = vld [vmem:[%s4 + $0x40] sm:$0xf]
      %v648 = vld [vmem:[%s4 + $0x44] sm:$0xf]
      %v649 = vld [vmem:[%s4 + $0x48] sm:$0xf]
      %v650 = vld [vmem:[%s4 + $0x4c] sm:$0xf]
      %v651 = vld [vmem:[%s4 + $0x50] sm:$0xf]
      %v652 = vld [vmem:[%s4 + $0x54] sm:$0xf]
      %v653 = vld [vmem:[%s4 + $0x58] sm:$0xf]
      %v654 = vld [vmem:[%s4 + $0x5c] sm:$0xf]
      %v655 = vld [vmem:[%s4 + $0x60] sm:$0xf]
      %v656 = vld [vmem:[%s4 + $0x64] sm:$0xf]
      %v657 = vld [vmem:[%s4 + $0x68] sm:$0xf]
      %v658 = vld [vmem:[%s4 + $0x6c] sm:$0xf]
      %v659 = vld [vmem:[%s4 + $0x70] sm:$0xf]
      %v660 = vld [vmem:[%s4 + $0x74] sm:$0xf]
      %v661 = vld [vmem:[%s4 + $0x78] sm:$0xf]
      %v662 = vld [vmem:[%s4 + $0x7c] sm:$0xf]
      %v663 = vrot.slane %v500, 1
      %v664 = vrot.slane %v501, 1
      %v665 = vrot.slane %v502, 1
      %v666 = vrot.slane %v503, 1
      %v667 = vrot.slane %v504, 1
      %v668 = vrot.slane %v505, 1
      %v669 = vrot.slane %v506, 1
      %v670 = vrot.slane %v507, 1
      %vm671 = vcmp.lt.s32.totalorder %v517, 7
      %v672 = vsel %vm671, %v669, %v670
      %v673 = vsel %vm671, %v668, %v669
      %v674 = vsel %vm671, %v667, %v668
      %v675 = vsel %vm671, %v666, %v667
      %v676 = vsel %vm671, %v665, %v666
      %v677 = vsel %vm671, %v664, %v665
      %v678 = vsel %vm671, %v663, %v664
      %v679 = vsel %vm671, %v670, %v663
      %680 = vset.pattern.permute.xlu0 2
      %681 = vperm.xlu0 %680, %v527
      %v682 = vpop.permute.xlu0 %681
      %684 = vset.pattern.permute.xlu0 2
      %685 = vperm.xlu0 %684, %v528
      %v686 = vpop.permute.xlu0 %685
      %688 = vset.pattern.permute.xlu0 2
      %689 = vperm.xlu0 %688, %v529
      %v690 = vpop.permute.xlu0 %689
      %692 = vset.pattern.permute.xlu0 2
      %693 = vperm.xlu0 %692, %v530
      %v694 = vpop.permute.xlu0 %693
      %696 = vset.pattern.permute.xlu0 2
      %697 = vperm.xlu0 %696, %v531
      %v698 = vpop.permute.xlu0 %697
      %700 = vset.pattern.permute.xlu0 2
      %701 = vperm.xlu0 %700, %v532
      %v702 = vpop.permute.xlu0 %701
      %704 = vset.pattern.permute.xlu0 2
      %705 = vperm.xlu0 %704, %v533
      %v706 = vpop.permute.xlu0 %705
      %708 = vset.pattern.permute.xlu0 2
      %709 = vperm.xlu0 %708, %v534
      %v710 = vpop.permute.xlu0 %709
      %v712 = vmul.f32 %v679, %v682
      %v713 = vmul.f32 %v678, %v686
      %v714 = vmul.f32 %v677, %v690
      %v715 = vmul.f32 %v676, %v694
      %v716 = vmul.f32 %v675, %v698
      %v717 = vmul.f32 %v674, %v702
      %v718 = vmul.f32 %v673, %v706
      %v719 = vmul.f32 %v672, %v710
      %v720 = vpack.c.bf16 %v713, %v712
      %v721 = vpack.c.bf16 %v715, %v714
      %v722 = vpack.c.bf16 %v717, %v716
      %v723 = vpack.c.bf16 %v719, %v718
      %724 = vset.pattern.permute.xlu0 3
      %725 = vperm.xlu0 %724, %v527
      %v726 = vpop.permute.xlu0 %725
      %728 = vset.pattern.permute.xlu0 3
      %729 = vperm.xlu0 %728, %v528
      %v730 = vpop.permute.xlu0 %729
      %732 = vset.pattern.permute.xlu0 3
      %733 = vperm.xlu0 %732, %v529
      %v734 = vpop.permute.xlu0 %733
      %736 = vset.pattern.permute.xlu0 3
      %737 = vperm.xlu0 %736, %v530
      %v738 = vpop.permute.xlu0 %737
      %740 = vset.pattern.permute.xlu0 3
      %741 = vperm.xlu0 %740, %v531
      %v742 = vpop.permute.xlu0 %741
      %744 = vset.pattern.permute.xlu0 3
      %745 = vperm.xlu0 %744, %v532
      %v746 = vpop.permute.xlu0 %745
      %748 = vset.pattern.permute.xlu0 3
      %749 = vperm.xlu0 %748, %v533
      %v750 = vpop.permute.xlu0 %749
      %752 = vset.pattern.permute.xlu0 3
      %753 = vperm.xlu0 %752, %v534
      %v754 = vpop.permute.xlu0 %753
      %v756 = vmul.f32 %v526, %v726
      %v757 = vmul.f32 %v525, %v730
      %v758 = vmul.f32 %v524, %v734
      %v759 = vmul.f32 %v523, %v738
      %v760 = vmul.f32 %v522, %v742
      %v761 = vmul.f32 %v521, %v746
      %v762 = vmul.f32 %v520, %v750
      %v763 = vmul.f32 %v519, %v754
      %v764 = vpack.c.bf16 %v757, %v756
      %v765 = vpack.c.bf16 %v759, %v758
      %v766 = vpack.c.bf16 %v761, %v760
      %v767 = vpack.c.bf16 %v763, %v762
      %s768 = scalar_lea.vmem %s4, 128
      %v769 = vld [vmem:[%s768] sm:$0xf]
      %v770 = vld [vmem:[%s768 + $0x4] sm:$0xf]
      %v771 = vld [vmem:[%s768 + $0x8] sm:$0xf]
      %v772 = vld [vmem:[%s768 + $0xc] sm:$0xf]
      %v773 = vld [vmem:[%s768 + $0x10] sm:$0xf]
      %v774 = vld [vmem:[%s768 + $0x14] sm:$0xf]
      %v775 = vld [vmem:[%s768 + $0x18] sm:$0xf]
      %v776 = vld [vmem:[%s768 + $0x1c] sm:$0xf]
      %v777 = vld [vmem:[%s768 + $0x20] sm:$0xf]
      %v778 = vld [vmem:[%s768 + $0x24] sm:$0xf]
      %v779 = vld [vmem:[%s768 + $0x28] sm:$0xf]
      %v780 = vld [vmem:[%s768 + $0x2c] sm:$0xf]
      %v781 = vld [vmem:[%s768 + $0x30] sm:$0xf]
      %v782 = vld [vmem:[%s768 + $0x34] sm:$0xf]
      %v783 = vld [vmem:[%s768 + $0x38] sm:$0xf]
      %v784 = vld [vmem:[%s768 + $0x3c] sm:$0xf]
      %v785 = vld [vmem:[%s768 + $0x40] sm:$0xf]
      %v786 = vld [vmem:[%s768 + $0x44] sm:$0xf]
      %v787 = vld [vmem:[%s768 + $0x48] sm:$0xf]
      %v788 = vld [vmem:[%s768 + $0x4c] sm:$0xf]
      %v789 = vld [vmem:[%s768 + $0x50] sm:$0xf]
      %v790 = vld [vmem:[%s768 + $0x54] sm:$0xf]
      %v791 = vld [vmem:[%s768 + $0x58] sm:$0xf]
      %v792 = vld [vmem:[%s768 + $0x5c] sm:$0xf]
      %v793 = vld [vmem:[%s768 + $0x60] sm:$0xf]
      %v794 = vld [vmem:[%s768 + $0x64] sm:$0xf]
      %v795 = vld [vmem:[%s768 + $0x68] sm:$0xf]
      %v796 = vld [vmem:[%s768 + $0x6c] sm:$0xf]
      %v797 = vld [vmem:[%s768 + $0x70] sm:$0xf]
      %v798 = vld [vmem:[%s768 + $0x74] sm:$0xf]
      %v799 = vld [vmem:[%s768 + $0x78] sm:$0xf]
      %v800 = vld [vmem:[%s768 + $0x7c] sm:$0xf]
      %v833 = vunpack.c.l.b16 %v769
      %v834 = vunpack.c.l.b16 %v770
      %v835 = vunpack.c.l.b16 %v771
      %v836 = vunpack.c.l.b16 %v772
      %v837 = vunpack.c.l.b16 %v773
      %v838 = vunpack.c.l.b16 %v774
      %v839 = vunpack.c.l.b16 %v775
      %v840 = vunpack.c.l.b16 %v776
      %v841 = vunpack.c.l.b16 %v777
      %v842 = vunpack.c.l.b16 %v778
      %v843 = vunpack.c.l.b16 %v779
      %v844 = vunpack.c.l.b16 %v780
      %v845 = vunpack.c.l.b16 %v781
      %v846 = vunpack.c.l.b16 %v782
      %v847 = vunpack.c.l.b16 %v783
      %v848 = vunpack.c.l.b16 %v784
      %v849 = vunpack.c.l.b16 %v785
      %v850 = vunpack.c.l.b16 %v786
      %v851 = vunpack.c.l.b16 %v787
      %v852 = vunpack.c.l.b16 %v788
      %v853 = vunpack.c.l.b16 %v789
      %v854 = vunpack.c.l.b16 %v790
      %v855 = vunpack.c.l.b16 %v791
      %v856 = vunpack.c.l.b16 %v792
      %v857 = vunpack.c.l.b16 %v793
      %v858 = vunpack.c.l.b16 %v794
      %v859 = vunpack.c.l.b16 %v795
      %v860 = vunpack.c.l.b16 %v796
      %v861 = vunpack.c.l.b16 %v797
      %v862 = vunpack.c.l.b16 %v798
      %v863 = vunpack.c.l.b16 %v799
      %v864 = vunpack.c.l.b16 %v800
      %v865 = vpack.c.b16 %v834, %v833
      %v866 = vpack.c.b16 %v836, %v835
      %v867 = vpack.c.b16 %v838, %v837
      %v868 = vpack.c.b16 %v840, %v839
      %v869 = vpack.c.b16 %v842, %v841
      %v870 = vpack.c.b16 %v844, %v843
      %v871 = vpack.c.b16 %v846, %v845
      %v872 = vpack.c.b16 %v848, %v847
      %v873 = vpack.c.b16 %v850, %v849
      %v874 = vpack.c.b16 %v852, %v851
      %v875 = vpack.c.b16 %v854, %v853
      %v876 = vpack.c.b16 %v856, %v855
      %v877 = vpack.c.b16 %v858, %v857
      %v878 = vpack.c.b16 %v860, %v859
      %v879 = vpack.c.b16 %v862, %v861
      %v880 = vpack.c.b16 %v864, %v863
      %897 = vmatprep.subr.bf16.mxu0 0
      %898 = vmatpush1.bf16.msra.mxu0 %v865
      %899 = vmatprep.subr.bf16.mxu0 0
      %900 = vmatpush1.bf16.msra.mxu0 %v866
      %901 = vmatprep.subr.bf16.mxu0 0
      %902 = vmatpush1.bf16.msra.mxu0 %v867
      %903 = vmatprep.subr.bf16.mxu0 0
      %904 = vmatpush1.bf16.msra.mxu0 %v868
      %905 = vmatprep.subr.bf16.mxu0 0
      %906 = vmatpush1.bf16.msra.mxu0 %v869
      %907 = vmatprep.subr.bf16.mxu0 0
      %908 = vmatpush1.bf16.msra.mxu0 %v870
      %909 = vmatprep.subr.bf16.mxu0 0
      %910 = vmatpush1.bf16.msra.mxu0 %v871
      %911 = vmatprep.subr.bf16.mxu0 0
      %912 = vmatpush1.bf16.msra.mxu0 %v872
      %913 = vmatprep.subr.bf16.mxu0 0
      %914 = vmatpush1.bf16.msra.mxu0 %v873
      %915 = vmatprep.subr.bf16.mxu0 0
      %916 = vmatpush1.bf16.msra.mxu0 %v874
      %917 = vmatprep.subr.bf16.mxu0 0
      %918 = vmatpush1.bf16.msra.mxu0 %v875
      %919 = vmatprep.subr.bf16.mxu0 0
      %920 = vmatpush1.bf16.msra.mxu0 %v876
      %921 = vmatprep.subr.bf16.mxu0 0
      %922 = vmatpush1.bf16.msra.mxu0 %v877
      %923 = vmatprep.subr.bf16.mxu0 0
      %924 = vmatpush1.bf16.msra.mxu0 %v878
      %925 = vmatprep.subr.bf16.mxu0 0
      %926 = vmatpush1.bf16.msra.mxu0 %v879
      %927 = vmatprep.subr.bf16.mxu0 0
      %928 = vmatpush1.bf16.msra.mxu0 %v880
      %929 = vmatprep.mubr.bf16.mxu0 %v764
      %930 = vmatmul.mubr.bf16.gmra.mrb[0].mxu0 %v720
      %v931 = vpop.f32.mrb[0].mxu0
      %v932 = vadd.f32 0.0, %v931
      %v933 = vpop.f32.mrb[0].mxu0
      %v934 = vpop.f32.mrb[0].mxu0
      %v935 = vadd.f32 0.0, %v934
      %v936 = vpop.f32.mrb[0].mxu0
      %937 = vmatprep.mubr.bf16.mxu0 %v765
      %938 = vmatmul.mubr.bf16.gmra.mrb[0].mxu0 %v721
      %v939 = vpop.f32.mrb[0].mxu0
      %v940 = vadd.f32 0.0, %v939
      %v941 = vpop.f32.mrb[0].mxu0
      %v942 = vpop.f32.mrb[0].mxu0
      %v943 = vadd.f32 0.0, %v942
      %v944 = vpop.f32.mrb[0].mxu0
      %945 = vmatprep.mubr.bf16.mxu0 %v766
      %946 = vmatmul.mubr.bf16.gmra.mrb[0].mxu0 %v722
      %v947 = vpop.f32.mrb[0].mxu0
      %v948 = vadd.f32 0.0, %v947
      %v949 = vpop.f32.mrb[0].mxu0
      %v950 = vpop.f32.mrb[0].mxu0
      %v951 = vadd.f32 0.0, %v950
      %v952 = vpop.f32.mrb[0].mxu0
      %953 = vmatprep.mubr.bf16.mxu0 %v767
      %954 = vmatmul.mubr.bf16.gmra.mrb[0].mxu0 %v723
      %v955 = vpop.f32.mrb[0].mxu0
      %v956 = vadd.f32 0.0, %v955
      %v957 = vpop.f32.mrb[0].mxu0
      %v958 = vpop.f32.mrb[0].mxu0
      %v959 = vadd.f32 0.0, %v958
      %v960 = vpop.f32.mrb[0].mxu0
      %961 = vdwg.mxu0
      %v994 = vunpack.c.l.b16 %v631
      %v995 = vunpack.c.l.b16 %v632
      %v996 = vunpack.c.l.b16 %v633
      %v997 = vunpack.c.l.b16 %v634
      %v998 = vunpack.c.l.b16 %v635
      %v999 = vunpack.c.l.b16 %v636
      %v1000 = vunpack.c.l.b16 %v637
      %v1001 = vunpack.c.l.b16 %v638
      %v1002 = vunpack.c.l.b16 %v639
      %v1003 = vunpack.c.l.b16 %v640
      %v1004 = vunpack.c.l.b16 %v641
      %v1005 = vunpack.c.l.b16 %v642
      %v1006 = vunpack.c.l.b16 %v643
      %v1007 = vunpack.c.l.b16 %v644
      %v1008 = vunpack.c.l.b16 %v645
      %v1009 = vunpack.c.l.b16 %v646
      %v1010 = vunpack.c.l.b16 %v647
      %v1011 = vunpack.c.l.b16 %v648
      %v1012 = vunpack.c.l.b16 %v649
      %v1013 = vunpack.c.l.b16 %v650
      %v1014 = vunpack.c.l.b16 %v651
      %v1015 = vunpack.c.l.b16 %v652
      %v1016 = vunpack.c.l.b16 %v653
      %v1017 = vunpack.c.l.b16 %v654
      %v1018 = vunpack.c.l.b16 %v655
      %v1019 = vunpack.c.l.b16 %v656
      %v1020 = vunpack.c.l.b16 %v657
      %v1021 = vunpack.c.l.b16 %v658
      %v1022 = vunpack.c.l.b16 %v659
      %v1023 = vunpack.c.l.b16 %v660
      %v1024 = vunpack.c.l.b16 %v661
      %v1025 = vunpack.c.l.b16 %v662
      %v1026 = vpack.c.b16 %v995, %v994
      %v1027 = vpack.c.b16 %v997, %v996
      %v1028 = vpack.c.b16 %v999, %v998
      %v1029 = vpack.c.b16 %v1001, %v1000
      %v1030 = vpack.c.b16 %v1003, %v1002
      %v1031 = vpack.c.b16 %v1005, %v1004
      %v1032 = vpack.c.b16 %v1007, %v1006
      %v1033 = vpack.c.b16 %v1009, %v1008
      %v1034 = vpack.c.b16 %v1011, %v1010
      %v1035 = vpack.c.b16 %v1013, %v1012
      %v1036 = vpack.c.b16 %v1015, %v1014
      %v1037 = vpack.c.b16 %v1017, %v1016
      %v1038 = vpack.c.b16 %v1019, %v1018
      %v1039 = vpack.c.b16 %v1021, %v1020
      %v1040 = vpack.c.b16 %v1023, %v1022
      %v1041 = vpack.c.b16 %v1025, %v1024
      %1058 = vmatprep.subr.bf16.mxu0 0
      %1059 = vmatpush1.bf16.msra.mxu0 %v1026
      %1060 = vmatprep.subr.bf16.mxu0 0
      %1061 = vmatpush1.bf16.msra.mxu0 %v1027
      %1062 = vmatprep.subr.bf16.mxu0 0
      %1063 = vmatpush1.bf16.msra.mxu0 %v1028
      %1064 = vmatprep.subr.bf16.mxu0 0
      %1065 = vmatpush1.bf16.msra.mxu0 %v1029
      %1066 = vmatprep.subr.bf16.mxu0 0
      %1067 = vmatpush1.bf16.msra.mxu0 %v1030
      %1068 = vmatprep.subr.bf16.mxu0 0
      %1069 = vmatpush1.bf16.msra.mxu0 %v1031
      %1070 = vmatprep.subr.bf16.mxu0 0
      %1071 = vmatpush1.bf16.msra.mxu0 %v1032
      %1072 = vmatprep.subr.bf16.mxu0 0
      %1073 = vmatpush1.bf16.msra.mxu0 %v1033
      %1074 = vmatprep.subr.bf16.mxu0 0
      %1075 = vmatpush1.bf16.msra.mxu0 %v1034
      %1076 = vmatprep.subr.bf16.mxu0 0
      %1077 = vmatpush1.bf16.msra.mxu0 %v1035
      %1078 = vmatprep.subr.bf16.mxu0 0
      %1079 = vmatpush1.bf16.msra.mxu0 %v1036
      %1080 = vmatprep.subr.bf16.mxu0 0
      %1081 = vmatpush1.bf16.msra.mxu0 %v1037
      %1082 = vmatprep.subr.bf16.mxu0 0
      %1083 = vmatpush1.bf16.msra.mxu0 %v1038
      %1084 = vmatprep.subr.bf16.mxu0 0
      %1085 = vmatpush1.bf16.msra.mxu0 %v1039
      %1086 = vmatprep.subr.bf16.mxu0 0
      %1087 = vmatpush1.bf16.msra.mxu0 %v1040
      %1088 = vmatprep.subr.bf16.mxu0 0
      %1089 = vmatpush1.bf16.msra.mxu0 %v1041
      %1090 = vmatprep.mubr.bf16.mxu0 %v627
      %1091 = vmatmul.mubr.bf16.gmra.mrb[0].mxu0 %v583
      %v1092 = vpop.f32.mrb[0].mxu0
      %v1093 = vadd.f32 %v932, %v1092
      %v1094 = vpop.f32.mrb[0].mxu0
      %v1095 = vpop.f32.mrb[0].mxu0
      %v1096 = vadd.f32 %v935, %v1095
      %v1097 = vpop.f32.mrb[0].mxu0
      %1098 = vmatprep.mubr.bf16.mxu0 %v628
      %1099 = vmatmul.mubr.bf16.gmra.mrb[0].mxu0 %v584
      %v1100 = vpop.f32.mrb[0].mxu0
      %v1101 = vadd.f32 %v940, %v1100
      %v1102 = vpop.f32.mrb[0].mxu0
      %v1103 = vpop.f32.mrb[0].mxu0
      %v1104 = vadd.f32 %v943, %v1103
      %v1105 = vpop.f32.mrb[0].mxu0
      %1106 = vmatprep.mubr.bf16.mxu0 %v629
      %1107 = vmatmul.mubr.bf16.gmra.mrb[0].mxu0 %v585
      %v1108 = vpop.f32.mrb[0].mxu0
      %v1109 = vadd.f32 %v948, %v1108
      %v1110 = vpop.f32.mrb[0].mxu0
      %v1111 = vpop.f32.mrb[0].mxu0
      %v1112 = vadd.f32 %v951, %v1111
      %v1113 = vpop.f32.mrb[0].mxu0
      %1114 = vmatprep.mubr.bf16.mxu0 %v630
      %1115 = vmatmul.mubr.bf16.gmra.mrb[0].mxu0 %v586
      %v1116 = vpop.f32.mrb[0].mxu0
      %v1117 = vadd.f32 %v956, %v1116
      %v1118 = vpop.f32.mrb[0].mxu0
      %v1119 = vpop.f32.mrb[0].mxu0
      %v1120 = vadd.f32 %v959, %v1119
      %v1121 = vpop.f32.mrb[0].mxu0
      %1122 = vdwg.mxu0
      %v1123 = vpack.c.bf16 %v501, %v500
      %v1124 = vpack.c.bf16 %v503, %v502
      %v1125 = vpack.c.bf16 %v505, %v504
      %v1126 = vpack.c.bf16 %v507, %v506
      %1127 = vset.pattern.permute.xlu0 4
      %1128 = vperm.xlu0 %1127, %v527
      %v1129 = vpop.permute.xlu0 %1128
      %1131 = vset.pattern.permute.xlu0 4
      %1132 = vperm.xlu0 %1131, %v528
      %v1133 = vpop.permute.xlu0 %1132
      %1135 = vset.pattern.permute.xlu0 4
      %1136 = vperm.xlu0 %1135, %v529
      %v1137 = vpop.permute.xlu0 %1136
      %1139 = vset.pattern.permute.xlu0 4
      %1140 = vperm.xlu0 %1139, %v530
      %v1141 = vpop.permute.xlu0 %1140
      %1143 = vset.pattern.permute.xlu0 4
      %1144 = vperm.xlu0 %1143, %v531
      %v1145 = vpop.permute.xlu0 %1144
      %1147 = vset.pattern.permute.xlu0 4
      %1148 = vperm.xlu0 %1147, %v532
      %v1149 = vpop.permute.xlu0 %1148
      %1151 = vset.pattern.permute.xlu0 4
      %1152 = vperm.xlu0 %1151, %v533
      %v1153 = vpop.permute.xlu0 %1152
      %1155 = vset.pattern.permute.xlu0 4
      %1156 = vperm.xlu0 %1155, %v534
      %v1157 = vpop.permute.xlu0 %1156
      %v1159 = vmul.f32 %v678, %v1129
      %v1160 = vmul.f32 %v677, %v1133
      %v1161 = vmul.f32 %v676, %v1137
      %v1162 = vmul.f32 %v675, %v1141
      %v1163 = vmul.f32 %v674, %v1145
      %v1164 = vmul.f32 %v673, %v1149
      %v1165 = vmul.f32 %v672, %v1153
      %v1166 = vmul.f32 %v679, %v1157
      %v1167 = vpack.c.bf16 %v1160, %v1159
      %v1168 = vpack.c.bf16 %v1162, %v1161
      %v1169 = vpack.c.bf16 %v1164, %v1163
      %v1170 = vpack.c.bf16 %v1166, %v1165
      %s1171 = scalar_lea.vmem %s4, 256
      %v1172 = vld [vmem:[%s1171] sm:$0xf]
      %v1173 = vld [vmem:[%s1171 + $0x4] sm:$0xf]
      %v1174 = vld [vmem:[%s1171 + $0x8] sm:$0xf]
      %v1175 = vld [vmem:[%s1171 + $0xc] sm:$0xf]
      %v1176 = vld [vmem:[%s1171 + $0x10] sm:$0xf]
      %v1177 = vld [vmem:[%s1171 + $0x14] sm:$0xf]
      %v1178 = vld [vmem:[%s1171 + $0x18] sm:$0xf]
      %v1179 = vld [vmem:[%s1171 + $0x1c] sm:$0xf]
      %v1180 = vld [vmem:[%s1171 + $0x20] sm:$0xf]
      %v1181 = vld [vmem:[%s1171 + $0x24] sm:$0xf]
      %v1182 = vld [vmem:[%s1171 + $0x28] sm:$0xf]
      %v1183 = vld [vmem:[%s1171 + $0x2c] sm:$0xf]
      %v1184 = vld [vmem:[%s1171 + $0x30] sm:$0xf]
      %v1185 = vld [vmem:[%s1171 + $0x34] sm:$0xf]
      %v1186 = vld [vmem:[%s1171 + $0x38] sm:$0xf]
      %v1187 = vld [vmem:[%s1171 + $0x3c] sm:$0xf]
      %v1188 = vld [vmem:[%s1171 + $0x40] sm:$0xf]
      %v1189 = vld [vmem:[%s1171 + $0x44] sm:$0xf]
      %v1190 = vld [vmem:[%s1171 + $0x48] sm:$0xf]
      %v1191 = vld [vmem:[%s1171 + $0x4c] sm:$0xf]
      %v1192 = vld [vmem:[%s1171 + $0x50] sm:$0xf]
      %v1193 = vld [vmem:[%s1171 + $0x54] sm:$0xf]
      %v1194 = vld [vmem:[%s1171 + $0x58] sm:$0xf]
      %v1195 = vld [vmem:[%s1171 + $0x5c] sm:$0xf]
      %v1196 = vld [vmem:[%s1171 + $0x60] sm:$0xf]
      %v1197 = vld [vmem:[%s1171 + $0x64] sm:$0xf]
      %v1198 = vld [vmem:[%s1171 + $0x68] sm:$0xf]
      %v1199 = vld [vmem:[%s1171 + $0x6c] sm:$0xf]
      %v1200 = vld [vmem:[%s1171 + $0x70] sm:$0xf]
      %v1201 = vld [vmem:[%s1171 + $0x74] sm:$0xf]
      %v1202 = vld [vmem:[%s1171 + $0x78] sm:$0xf]
      %v1203 = vld [vmem:[%s1171 + $0x7c] sm:$0xf]
      %v1236 = vunpack.c.l.b16 %v1172
      %v1237 = vunpack.c.l.b16 %v1173
      %v1238 = vunpack.c.l.b16 %v1174
      %v1239 = vunpack.c.l.b16 %v1175
      %v1240 = vunpack.c.l.b16 %v1176
      %v1241 = vunpack.c.l.b16 %v1177
      %v1242 = vunpack.c.l.b16 %v1178
      %v1243 = vunpack.c.l.b16 %v1179
      %v1244 = vunpack.c.l.b16 %v1180
      %v1245 = vunpack.c.l.b16 %v1181
      %v1246 = vunpack.c.l.b16 %v1182
      %v1247 = vunpack.c.l.b16 %v1183
      %v1248 = vunpack.c.l.b16 %v1184
      %v1249 = vunpack.c.l.b16 %v1185
      %v1250 = vunpack.c.l.b16 %v1186
      %v1251 = vunpack.c.l.b16 %v1187
      %v1252 = vunpack.c.l.b16 %v1188
      %v1253 = vunpack.c.l.b16 %v1189
      %v1254 = vunpack.c.l.b16 %v1190
      %v1255 = vunpack.c.l.b16 %v1191
      %v1256 = vunpack.c.l.b16 %v1192
      %v1257 = vunpack.c.l.b16 %v1193
      %v1258 = vunpack.c.l.b16 %v1194
      %v1259 = vunpack.c.l.b16 %v1195
      %v1260 = vunpack.c.l.b16 %v1196
      %v1261 = vunpack.c.l.b16 %v1197
      %v1262 = vunpack.c.l.b16 %v1198
      %v1263 = vunpack.c.l.b16 %v1199
      %v1264 = vunpack.c.l.b16 %v1200
      %v1265 = vunpack.c.l.b16 %v1201
      %v1266 = vunpack.c.l.b16 %v1202
      %v1267 = vunpack.c.l.b16 %v1203
      %v1268 = vpack.c.b16 %v1237, %v1236
      %v1269 = vpack.c.b16 %v1239, %v1238
      %v1270 = vpack.c.b16 %v1241, %v1240
      %v1271 = vpack.c.b16 %v1243, %v1242
      %v1272 = vpack.c.b16 %v1245, %v1244
      %v1273 = vpack.c.b16 %v1247, %v1246
      %v1274 = vpack.c.b16 %v1249, %v1248
      %v1275 = vpack.c.b16 %v1251, %v1250
      %v1276 = vpack.c.b16 %v1253, %v1252
      %v1277 = vpack.c.b16 %v1255, %v1254
      %v1278 = vpack.c.b16 %v1257, %v1256
      %v1279 = vpack.c.b16 %v1259, %v1258
      %v1280 = vpack.c.b16 %v1261, %v1260
      %v1281 = vpack.c.b16 %v1263, %v1262
      %v1282 = vpack.c.b16 %v1265, %v1264
      %v1283 = vpack.c.b16 %v1267, %v1266
      %1300 = vmatprep.subr.bf16.mxu0 0
      %1301 = vmatpush1.bf16.msra.mxu0 %v1268
      %1302 = vmatprep.subr.bf16.mxu0 0
      %1303 = vmatpush1.bf16.msra.mxu0 %v1269
      %1304 = vmatprep.subr.bf16.mxu0 0
      %1305 = vmatpush1.bf16.msra.mxu0 %v1270
      %1306 = vmatprep.subr.bf16.mxu0 0
      %1307 = vmatpush1.bf16.msra.mxu0 %v1271
      %1308 = vmatprep.subr.bf16.mxu0 0
      %1309 = vmatpush1.bf16.msra.mxu0 %v1272
      %1310 = vmatprep.subr.bf16.mxu0 0
      %1311 = vmatpush1.bf16.msra.mxu0 %v1273
      %1312 = vmatprep.subr.bf16.mxu0 0
      %1313 = vmatpush1.bf16.msra.mxu0 %v1274
      %1314 = vmatprep.subr.bf16.mxu0 0
      %1315 = vmatpush1.bf16.msra.mxu0 %v1275
      %1316 = vmatprep.subr.bf16.mxu0 0
      %1317 = vmatpush1.bf16.msra.mxu0 %v1276
      %1318 = vmatprep.subr.bf16.mxu0 0
      %1319 = vmatpush1.bf16.msra.mxu0 %v1277
      %1320 = vmatprep.subr.bf16.mxu0 0
      %1321 = vmatpush1.bf16.msra.mxu0 %v1278
      %1322 = vmatprep.subr.bf16.mxu0 0
      %1323 = vmatpush1.bf16.msra.mxu0 %v1279
      %1324 = vmatprep.subr.bf16.mxu0 0
      %1325 = vmatpush1.bf16.msra.mxu0 %v1280
      %1326 = vmatprep.subr.bf16.mxu0 0
      %1327 = vmatpush1.bf16.msra.mxu0 %v1281
      %1328 = vmatprep.subr.bf16.mxu0 0
      %1329 = vmatpush1.bf16.msra.mxu0 %v1282
      %1330 = vmatprep.subr.bf16.mxu0 0
      %1331 = vmatpush1.bf16.msra.mxu0 %v1283
      %1332 = vmatprep.mubr.bf16.mxu0 %v1167
      %1333 = vmatmul.mubr.bf16.gmra.mrb[0].mxu0 %v1123
      %v1334 = vpop.f32.mrb[0].mxu0
      %v1335 = vadd.f32 0.0, %v1334
      %v1336 = vpop.f32.mrb[0].mxu0
      %v1337 = vpop.f32.mrb[0].mxu0
      %v1338 = vadd.f32 0.0, %v1337
      %v1339 = vpop.f32.mrb[0].mxu0
      %1340 = vmatprep.mubr.bf16.mxu0 %v1168
      %1341 = vmatmul.mubr.bf16.gmra.mrb[0].mxu0 %v1124
      %v1342 = vpop.f32.mrb[0].mxu0
      %v1343 = vadd.f32 0.0, %v1342
      %v1344 = vpop.f32.mrb[0].mxu0
      %v1345 = vpop.f32.mrb[0].mxu0
      %v1346 = vadd.f32 0.0, %v1345
      %v1347 = vpop.f32.mrb[0].mxu0
      %1348 = vmatprep.mubr.bf16.mxu0 %v1169
      %1349 = vmatmul.mubr.bf16.gmra.mrb[0].mxu0 %v1125
      %v1350 = vpop.f32.mrb[0].mxu0
      %v1351 = vadd.f32 0.0, %v1350
      %v1352 = vpop.f32.mrb[0].mxu0
      %v1353 = vpop.f32.mrb[0].mxu0
      %v1354 = vadd.f32 0.0, %v1353
      %v1355 = vpop.f32.mrb[0].mxu0
      %1356 = vmatprep.mubr.bf16.mxu0 %v1170
      %1357 = vmatmul.mubr.bf16.gmra.mrb[0].mxu0 %v1126
      %v1358 = vpop.f32.mrb[0].mxu0
      %v1359 = vadd.f32 0.0, %v1358
      %v1360 = vpop.f32.mrb[0].mxu0
      %v1361 = vpop.f32.mrb[0].mxu0
      %v1362 = vadd.f32 0.0, %v1361
      %v1363 = vpop.f32.mrb[0].mxu0
      %1364 = vdwg.mxu0
      %v1365 = vadd.f32 %v1093, %v1335
      %v1366 = vadd.f32 %v1096, %v1338
      %v1367 = vadd.f32 %v1101, %v1343
      %v1368 = vadd.f32 %v1104, %v1346
      %v1369 = vadd.f32 %v1109, %v1351
      %v1370 = vadd.f32 %v1112, %v1354
      %v1371 = vadd.f32 %v1117, %v1359
      %v1372 = vadd.f32 %v1120, %v1362
      %1373 = vset.pattern.permute.xlu0 5
      %1374 = vperm.xlu0 %1373, %v527
      %v1375 = vpop.permute.xlu0 %1374
      %1377 = vset.pattern.permute.xlu0 5
      %1378 = vperm.xlu0 %1377, %v528
      %v1379 = vpop.permute.xlu0 %1378
      %1381 = vset.pattern.permute.xlu0 5
      %1382 = vperm.xlu0 %1381, %v529
      %v1383 = vpop.permute.xlu0 %1382
      %1385 = vset.pattern.permute.xlu0 5
      %1386 = vperm.xlu0 %1385, %v530
      %v1387 = vpop.permute.xlu0 %1386
      %1389 = vset.pattern.permute.xlu0 5
      %1390 = vperm.xlu0 %1389, %v531
      %v1391 = vpop.permute.xlu0 %1390
      %1393 = vset.pattern.permute.xlu0 5
      %1394 = vperm.xlu0 %1393, %v532
      %v1395 = vpop.permute.xlu0 %1394
      %1397 = vset.pattern.permute.xlu0 5
      %1398 = vperm.xlu0 %1397, %v533
      %v1399 = vpop.permute.xlu0 %1398
      %1401 = vset.pattern.permute.xlu0 5
      %1402 = vperm.xlu0 %1401, %v534
      %v1403 = vpop.permute.xlu0 %1402
      %v1405 = vmul.f32 %v525, %v1375
      %v1406 = vmul.f32 %v524, %v1379
      %v1407 = vmul.f32 %v523, %v1383
      %v1408 = vmul.f32 %v522, %v1387
      %v1409 = vmul.f32 %v521, %v1391
      %v1410 = vmul.f32 %v520, %v1395
      %v1411 = vmul.f32 %v519, %v1399
      %v1412 = vmul.f32 %v526, %v1403
      %v1413 = vpack.c.bf16 %v1406, %v1405
      %v1414 = vpack.c.bf16 %v1408, %v1407
      %v1415 = vpack.c.bf16 %v1410, %v1409
      %v1416 = vpack.c.bf16 %v1412, %v1411
      %1417 = vset.pattern.permute.xlu0 6
      %1418 = vperm.xlu0 %1417, %v527
      %v1419 = vpop.permute.xlu0 %1418
      %1421 = vset.pattern.permute.xlu0 6
      %1422 = vperm.xlu0 %1421, %v528
      %v1423 = vpop.permute.xlu0 %1422
      %1425 = vset.pattern.permute.xlu0 6
      %1426 = vperm.xlu0 %1425, %v529
      %v1427 = vpop.permute.xlu0 %1426
      %1429 = vset.pattern.permute.xlu0 6
      %1430 = vperm.xlu0 %1429, %v530
      %v1431 = vpop.permute.xlu0 %1430
      %1433 = vset.pattern.permute.xlu0 6
      %1434 = vperm.xlu0 %1433, %v531
      %v1435 = vpop.permute.xlu0 %1434
      %1437 = vset.pattern.permute.xlu0 6
      %1438 = vperm.xlu0 %1437, %v532
      %v1439 = vpop.permute.xlu0 %1438
      %1441 = vset.pattern.permute.xlu0 6
      %1442 = vperm.xlu0 %1441, %v533
      %v1443 = vpop.permute.xlu0 %1442
      %1445 = vset.pattern.permute.xlu0 6
      %1446 = vperm.xlu0 %1445, %v534
      %v1447 = vpop.permute.xlu0 %1446
      %v1449 = vmul.f32 %v501, %v1419
      %v1450 = vmul.f32 %v502, %v1423
      %v1451 = vmul.f32 %v503, %v1427
      %v1452 = vmul.f32 %v504, %v1431
      %v1453 = vmul.f32 %v505, %v1435
      %v1454 = vmul.f32 %v506, %v1439
      %v1455 = vmul.f32 %v507, %v1443
      %v1456 = vmul.f32 %v500, %v1447
      %v1457 = vpack.c.bf16 %v1450, %v1449
      %v1458 = vpack.c.bf16 %v1452, %v1451
      %v1459 = vpack.c.bf16 %v1454, %v1453
      %v1460 = vpack.c.bf16 %v1456, %v1455
      %s1461 = scalar_lea.vmem %s4, 384
      %v1462 = vld [vmem:[%s1461] sm:$0xf]
      %v1463 = vld [vmem:[%s1461 + $0x4] sm:$0xf]
      %v1464 = vld [vmem:[%s1461 + $0x8] sm:$0xf]
      %v1465 = vld [vmem:[%s1461 + $0xc] sm:$0xf]
      %v1466 = vld [vmem:[%s1461 + $0x10] sm:$0xf]
      %v1467 = vld [vmem:[%s1461 + $0x14] sm:$0xf]
      %v1468 = vld [vmem:[%s1461 + $0x18] sm:$0xf]
      %v1469 = vld [vmem:[%s1461 + $0x1c] sm:$0xf]
      %v1470 = vld [vmem:[%s1461 + $0x20] sm:$0xf]
      %v1471 = vld [vmem:[%s1461 + $0x24] sm:$0xf]
      %v1472 = vld [vmem:[%s1461 + $0x28] sm:$0xf]
      %v1473 = vld [vmem:[%s1461 + $0x2c] sm:$0xf]
      %v1474 = vld [vmem:[%s1461 + $0x30] sm:$0xf]
      %v1475 = vld [vmem:[%s1461 + $0x34] sm:$0xf]
      %v1476 = vld [vmem:[%s1461 + $0x38] sm:$0xf]
      %v1477 = vld [vmem:[%s1461 + $0x3c] sm:$0xf]
      %v1478 = vld [vmem:[%s1461 + $0x40] sm:$0xf]
      %v1479 = vld [vmem:[%s1461 + $0x44] sm:$0xf]
      %v1480 = vld [vmem:[%s1461 + $0x48] sm:$0xf]
      %v1481 = vld [vmem:[%s1461 + $0x4c] sm:$0xf]
      %v1482 = vld [vmem:[%s1461 + $0x50] sm:$0xf]
      %v1483 = vld [vmem:[%s1461 + $0x54] sm:$0xf]
      %v1484 = vld [vmem:[%s1461 + $0x58] sm:$0xf]
      %v1485 = vld [vmem:[%s1461 + $0x5c] sm:$0xf]
      %v1486 = vld [vmem:[%s1461 + $0x60] sm:$0xf]
      %v1487 = vld [vmem:[%s1461 + $0x64] sm:$0xf]
      %v1488 = vld [vmem:[%s1461 + $0x68] sm:$0xf]
      %v1489 = vld [vmem:[%s1461 + $0x6c] sm:$0xf]
      %v1490 = vld [vmem:[%s1461 + $0x70] sm:$0xf]
      %v1491 = vld [vmem:[%s1461 + $0x74] sm:$0xf]
      %v1492 = vld [vmem:[%s1461 + $0x78] sm:$0xf]
      %v1493 = vld [vmem:[%s1461 + $0x7c] sm:$0xf]
      %v1526 = vunpack.c.l.b16 %v1462
      %v1527 = vunpack.c.l.b16 %v1463
      %v1528 = vunpack.c.l.b16 %v1464
      %v1529 = vunpack.c.l.b16 %v1465
      %v1530 = vunpack.c.l.b16 %v1466
      %v1531 = vunpack.c.l.b16 %v1467
      %v1532 = vunpack.c.l.b16 %v1468
      %v1533 = vunpack.c.l.b16 %v1469
      %v1534 = vunpack.c.l.b16 %v1470
      %v1535 = vunpack.c.l.b16 %v1471
      %v1536 = vunpack.c.l.b16 %v1472
      %v1537 = vunpack.c.l.b16 %v1473
      %v1538 = vunpack.c.l.b16 %v1474
      %v1539 = vunpack.c.l.b16 %v1475
      %v1540 = vunpack.c.l.b16 %v1476
      %v1541 = vunpack.c.l.b16 %v1477
      %v1542 = vunpack.c.l.b16 %v1478
      %v1543 = vunpack.c.l.b16 %v1479
      %v1544 = vunpack.c.l.b16 %v1480
      %v1545 = vunpack.c.l.b16 %v1481
      %v1546 = vunpack.c.l.b16 %v1482
      %v1547 = vunpack.c.l.b16 %v1483
      %v1548 = vunpack.c.l.b16 %v1484
      %v1549 = vunpack.c.l.b16 %v1485
      %v1550 = vunpack.c.l.b16 %v1486
      %v1551 = vunpack.c.l.b16 %v1487
      %v1552 = vunpack.c.l.b16 %v1488
      %v1553 = vunpack.c.l.b16 %v1489
      %v1554 = vunpack.c.l.b16 %v1490
      %v1555 = vunpack.c.l.b16 %v1491
      %v1556 = vunpack.c.l.b16 %v1492
      %v1557 = vunpack.c.l.b16 %v1493
      %v1558 = vpack.c.b16 %v1527, %v1526
      %v1559 = vpack.c.b16 %v1529, %v1528
      %v1560 = vpack.c.b16 %v1531, %v1530
      %v1561 = vpack.c.b16 %v1533, %v1532
      %v1562 = vpack.c.b16 %v1535, %v1534
      %v1563 = vpack.c.b16 %v1537, %v1536
      %v1564 = vpack.c.b16 %v1539, %v1538
      %v1565 = vpack.c.b16 %v1541, %v1540
      %v1566 = vpack.c.b16 %v1543, %v1542
      %v1567 = vpack.c.b16 %v1545, %v1544
      %v1568 = vpack.c.b16 %v1547, %v1546
      %v1569 = vpack.c.b16 %v1549, %v1548
      %v1570 = vpack.c.b16 %v1551, %v1550
      %v1571 = vpack.c.b16 %v1553, %v1552
      %v1572 = vpack.c.b16 %v1555, %v1554
      %v1573 = vpack.c.b16 %v1557, %v1556
      %1590 = vmatprep.subr.bf16.mxu0 0
      %1591 = vmatpush1.bf16.msra.mxu0 %v1558
      %1592 = vmatprep.subr.bf16.mxu0 0
      %1593 = vmatpush1.bf16.msra.mxu0 %v1559
      %1594 = vmatprep.subr.bf16.mxu0 0
      %1595 = vmatpush1.bf16.msra.mxu0 %v1560
      %1596 = vmatprep.subr.bf16.mxu0 0
      %1597 = vmatpush1.bf16.msra.mxu0 %v1561
      %1598 = vmatprep.subr.bf16.mxu0 0
      %1599 = vmatpush1.bf16.msra.mxu0 %v1562
      %1600 = vmatprep.subr.bf16.mxu0 0
      %1601 = vmatpush1.bf16.msra.mxu0 %v1563
      %1602 = vmatprep.subr.bf16.mxu0 0
      %1603 = vmatpush1.bf16.msra.mxu0 %v1564
      %1604 = vmatprep.subr.bf16.mxu0 0
      %1605 = vmatpush1.bf16.msra.mxu0 %v1565
      %1606 = vmatprep.subr.bf16.mxu0 0
      %1607 = vmatpush1.bf16.msra.mxu0 %v1566
      %1608 = vmatprep.subr.bf16.mxu0 0
      %1609 = vmatpush1.bf16.msra.mxu0 %v1567
      %1610 = vmatprep.subr.bf16.mxu0 0
      %1611 = vmatpush1.bf16.msra.mxu0 %v1568
      %1612 = vmatprep.subr.bf16.mxu0 0
      %1613 = vmatpush1.bf16.msra.mxu0 %v1569
      %1614 = vmatprep.subr.bf16.mxu0 0
      %1615 = vmatpush1.bf16.msra.mxu0 %v1570
      %1616 = vmatprep.subr.bf16.mxu0 0
      %1617 = vmatpush1.bf16.msra.mxu0 %v1571
      %1618 = vmatprep.subr.bf16.mxu0 0
      %1619 = vmatpush1.bf16.msra.mxu0 %v1572
      %1620 = vmatprep.subr.bf16.mxu0 0
      %1621 = vmatpush1.bf16.msra.mxu0 %v1573
      %1622 = vmatprep.mubr.bf16.mxu0 %v1457
      %1623 = vmatmul.mubr.bf16.gmra.mrb[0].mxu0 %v1413
      %v1624 = vpop.f32.mrb[0].mxu0
      %v1625 = vadd.f32 0.0, %v1624
      %v1626 = vpop.f32.mrb[0].mxu0
      %v1627 = vpop.f32.mrb[0].mxu0
      %v1628 = vadd.f32 0.0, %v1627
      %v1629 = vpop.f32.mrb[0].mxu0
      %1630 = vmatprep.mubr.bf16.mxu0 %v1458
      %1631 = vmatmul.mubr.bf16.gmra.mrb[0].mxu0 %v1414
      %v1632 = vpop.f32.mrb[0].mxu0
      %v1633 = vadd.f32 0.0, %v1632
      %v1634 = vpop.f32.mrb[0].mxu0
      %v1635 = vpop.f32.mrb[0].mxu0
      %v1636 = vadd.f32 0.0, %v1635
      %v1637 = vpop.f32.mrb[0].mxu0
      %1638 = vmatprep.mubr.bf16.mxu0 %v1459
      %1639 = vmatmul.mubr.bf16.gmra.mrb[0].mxu0 %v1415
      %v1640 = vpop.f32.mrb[0].mxu0
      %v1641 = vadd.f32 0.0, %v1640
      %v1642 = vpop.f32.mrb[0].mxu0
      %v1643 = vpop.f32.mrb[0].mxu0
      %v1644 = vadd.f32 0.0, %v1643
      %v1645 = vpop.f32.mrb[0].mxu0
      %1646 = vmatprep.mubr.bf16.mxu0 %v1460
      %1647 = vmatmul.mubr.bf16.gmra.mrb[0].mxu0 %v1416
      %v1648 = vpop.f32.mrb[0].mxu0
      %v1649 = vadd.f32 0.0, %v1648
      %v1650 = vpop.f32.mrb[0].mxu0
      %v1651 = vpop.f32.mrb[0].mxu0
      %v1652 = vadd.f32 0.0, %v1651
      %v1653 = vpop.f32.mrb[0].mxu0
      %1654 = vdwg.mxu0
      %v1655 = vadd.f32 %v1365, %v1625
      %v1656 = vadd.f32 %v1366, %v1628
      %v1657 = vadd.f32 %v1367, %v1633
      %v1658 = vadd.f32 %v1368, %v1636
      %v1659 = vadd.f32 %v1369, %v1641
      %v1660 = vadd.f32 %v1370, %v1644
      %v1661 = vadd.f32 %v1371, %v1649
      %v1662 = vadd.f32 %v1372, %v1652
      %1663 = vset.pattern.permute.xlu0 7
      %1664 = vperm.xlu0 %1663, %v527
      %v1665 = vpop.permute.xlu0 %1664
      %1667 = vset.pattern.permute.xlu0 7
      %1668 = vperm.xlu0 %1667, %v528
      %v1669 = vpop.permute.xlu0 %1668
      %1671 = vset.pattern.permute.xlu0 7
      %1672 = vperm.xlu0 %1671, %v529
      %v1673 = vpop.permute.xlu0 %1672
      %1675 = vset.pattern.permute.xlu0 7
      %1676 = vperm.xlu0 %1675, %v530
      %v1677 = vpop.permute.xlu0 %1676
      %1679 = vset.pattern.permute.xlu0 7
      %1680 = vperm.xlu0 %1679, %v531
      %v1681 = vpop.permute.xlu0 %1680
      %1683 = vset.pattern.permute.xlu0 7
      %1684 = vperm.xlu0 %1683, %v532
      %v1685 = vpop.permute.xlu0 %1684
      %1687 = vset.pattern.permute.xlu0 7
      %1688 = vperm.xlu0 %1687, %v533
      %v1689 = vpop.permute.xlu0 %1688
      %1691 = vset.pattern.permute.xlu0 7
      %1692 = vperm.xlu0 %1691, %v534
      %v1693 = vpop.permute.xlu0 %1692
      %v1695 = vmul.f32 %v677, %v1665
      %v1696 = vmul.f32 %v676, %v1669
      %v1697 = vmul.f32 %v675, %v1673
      %v1698 = vmul.f32 %v674, %v1677
      %v1699 = vmul.f32 %v673, %v1681
      %v1700 = vmul.f32 %v672, %v1685
      %v1701 = vmul.f32 %v679, %v1689
      %v1702 = vmul.f32 %v678, %v1693
      %v1703 = vpack.c.bf16 %v1696, %v1695
      %v1704 = vpack.c.bf16 %v1698, %v1697
      %v1705 = vpack.c.bf16 %v1700, %v1699
      %v1706 = vpack.c.bf16 %v1702, %v1701
      %s1707 = scalar_lea.vmem %s4, 512
      %v1708 = vld [vmem:[%s1707] sm:$0xf]
      %v1709 = vld [vmem:[%s1707 + $0x4] sm:$0xf]
      %v1710 = vld [vmem:[%s1707 + $0x8] sm:$0xf]
      %v1711 = vld [vmem:[%s1707 + $0xc] sm:$0xf]
      %v1712 = vld [vmem:[%s1707 + $0x10] sm:$0xf]
      %v1713 = vld [vmem:[%s1707 + $0x14] sm:$0xf]
      %v1714 = vld [vmem:[%s1707 + $0x18] sm:$0xf]
      %v1715 = vld [vmem:[%s1707 + $0x1c] sm:$0xf]
      %v1716 = vld [vmem:[%s1707 + $0x20] sm:$0xf]
      %v1717 = vld [vmem:[%s1707 + $0x24] sm:$0xf]
      %v1718 = vld [vmem:[%s1707 + $0x28] sm:$0xf]
      %v1719 = vld [vmem:[%s1707 + $0x2c] sm:$0xf]
      %v1720 = vld [vmem:[%s1707 + $0x30] sm:$0xf]
      %v1721 = vld [vmem:[%s1707 + $0x34] sm:$0xf]
      %v1722 = vld [vmem:[%s1707 + $0x38] sm:$0xf]
      %v1723 = vld [vmem:[%s1707 + $0x3c] sm:$0xf]
      %v1724 = vld [vmem:[%s1707 + $0x40] sm:$0xf]
      %v1725 = vld [vmem:[%s1707 + $0x44] sm:$0xf]
      %v1726 = vld [vmem:[%s1707 + $0x48] sm:$0xf]
      %v1727 = vld [vmem:[%s1707 + $0x4c] sm:$0xf]
      %v1728 = vld [vmem:[%s1707 + $0x50] sm:$0xf]
      %v1729 = vld [vmem:[%s1707 + $0x54] sm:$0xf]
      %v1730 = vld [vmem:[%s1707 + $0x58] sm:$0xf]
      %v1731 = vld [vmem:[%s1707 + $0x5c] sm:$0xf]
      %v1732 = vld [vmem:[%s1707 + $0x60] sm:$0xf]
      %v1733 = vld [vmem:[%s1707 + $0x64] sm:$0xf]
      %v1734 = vld [vmem:[%s1707 + $0x68] sm:$0xf]
      %v1735 = vld [vmem:[%s1707 + $0x6c] sm:$0xf]
      %v1736 = vld [vmem:[%s1707 + $0x70] sm:$0xf]
      %v1737 = vld [vmem:[%s1707 + $0x74] sm:$0xf]
      %v1738 = vld [vmem:[%s1707 + $0x78] sm:$0xf]
      %v1739 = vld [vmem:[%s1707 + $0x7c] sm:$0xf]
      %v1772 = vunpack.c.l.b16 %v1708
      %v1773 = vunpack.c.l.b16 %v1709
      %v1774 = vunpack.c.l.b16 %v1710
      %v1775 = vunpack.c.l.b16 %v1711
      %v1776 = vunpack.c.l.b16 %v1712
      %v1777 = vunpack.c.l.b16 %v1713
      %v1778 = vunpack.c.l.b16 %v1714
      %v1779 = vunpack.c.l.b16 %v1715
      %v1780 = vunpack.c.l.b16 %v1716
      %v1781 = vunpack.c.l.b16 %v1717
      %v1782 = vunpack.c.l.b16 %v1718
      %v1783 = vunpack.c.l.b16 %v1719
      %v1784 = vunpack.c.l.b16 %v1720
      %v1785 = vunpack.c.l.b16 %v1721
      %v1786 = vunpack.c.l.b16 %v1722
      %v1787 = vunpack.c.l.b16 %v1723
      %v1788 = vunpack.c.l.b16 %v1724
      %v1789 = vunpack.c.l.b16 %v1725
      %v1790 = vunpack.c.l.b16 %v1726
      %v1791 = vunpack.c.l.b16 %v1727
      %v1792 = vunpack.c.l.b16 %v1728
      %v1793 = vunpack.c.l.b16 %v1729
      %v1794 = vunpack.c.l.b16 %v1730
      %v1795 = vunpack.c.l.b16 %v1731
      %v1796 = vunpack.c.l.b16 %v1732
      %v1797 = vunpack.c.l.b16 %v1733
      %v1798 = vunpack.c.l.b16 %v1734
      %v1799 = vunpack.c.l.b16 %v1735
      %v1800 = vunpack.c.l.b16 %v1736
      %v1801 = vunpack.c.l.b16 %v1737
      %v1802 = vunpack.c.l.b16 %v1738
      %v1803 = vunpack.c.l.b16 %v1739
      %v1804 = vpack.c.b16 %v1773, %v1772
      %v1805 = vpack.c.b16 %v1775, %v1774
      %v1806 = vpack.c.b16 %v1777, %v1776
      %v1807 = vpack.c.b16 %v1779, %v1778
      %v1808 = vpack.c.b16 %v1781, %v1780
      %v1809 = vpack.c.b16 %v1783, %v1782
      %v1810 = vpack.c.b16 %v1785, %v1784
      %v1811 = vpack.c.b16 %v1787, %v1786
      %v1812 = vpack.c.b16 %v1789, %v1788
      %v1813 = vpack.c.b16 %v1791, %v1790
      %v1814 = vpack.c.b16 %v1793, %v1792
      %v1815 = vpack.c.b16 %v1795, %v1794
      %v1816 = vpack.c.b16 %v1797, %v1796
      %v1817 = vpack.c.b16 %v1799, %v1798
      %v1818 = vpack.c.b16 %v1801, %v1800
      %v1819 = vpack.c.b16 %v1803, %v1802
      %1836 = vmatprep.subr.bf16.mxu0 0
      %1837 = vmatpush1.bf16.msra.mxu0 %v1804
      %1838 = vmatprep.subr.bf16.mxu0 0
      %1839 = vmatpush1.bf16.msra.mxu0 %v1805
      %1840 = vmatprep.subr.bf16.mxu0 0
      %1841 = vmatpush1.bf16.msra.mxu0 %v1806
      %1842 = vmatprep.subr.bf16.mxu0 0
      %1843 = vmatpush1.bf16.msra.mxu0 %v1807
      %1844 = vmatprep.subr.bf16.mxu0 0
      %1845 = vmatpush1.bf16.msra.mxu0 %v1808
      %1846 = vmatprep.subr.bf16.mxu0 0
      %1847 = vmatpush1.bf16.msra.mxu0 %v1809
      %1848 = vmatprep.subr.bf16.mxu0 0
      %1849 = vmatpush1.bf16.msra.mxu0 %v1810
      %1850 = vmatprep.subr.bf16.mxu0 0
      %1851 = vmatpush1.bf16.msra.mxu0 %v1811
      %1852 = vmatprep.subr.bf16.mxu0 0
      %1853 = vmatpush1.bf16.msra.mxu0 %v1812
      %1854 = vmatprep.subr.bf16.mxu0 0
      %1855 = vmatpush1.bf16.msra.mxu0 %v1813
      %1856 = vmatprep.subr.bf16.mxu0 0
      %1857 = vmatpush1.bf16.msra.mxu0 %v1814
      %1858 = vmatprep.subr.bf16.mxu0 0
      %1859 = vmatpush1.bf16.msra.mxu0 %v1815
      %1860 = vmatprep.subr.bf16.mxu0 0
      %1861 = vmatpush1.bf16.msra.mxu0 %v1816
      %1862 = vmatprep.subr.bf16.mxu0 0
      %1863 = vmatpush1.bf16.msra.mxu0 %v1817
      %1864 = vmatprep.subr.bf16.mxu0 0
      %1865 = vmatpush1.bf16.msra.mxu0 %v1818
      %1866 = vmatprep.subr.bf16.mxu0 0
      %1867 = vmatpush1.bf16.msra.mxu0 %v1819
      %1868 = vmatprep.mubr.bf16.mxu0 %v1703
      %1869 = vmatmul.mubr.bf16.gmra.mrb[0].mxu0 %v1703
      %v1870 = vpop.f32.mrb[0].mxu0
      %v1871 = vadd.f32 0.0, %v1870
      %v1872 = vpop.f32.mrb[0].mxu0
      %v1873 = vpop.f32.mrb[0].mxu0
      %v1874 = vadd.f32 0.0, %v1873
      %v1875 = vpop.f32.mrb[0].mxu0
      %1876 = vmatprep.mubr.bf16.mxu0 %v1704
      %1877 = vmatmul.mubr.bf16.gmra.mrb[0].mxu0 %v1704
      %v1878 = vpop.f32.mrb[0].mxu0
      %v1879 = vadd.f32 0.0, %v1878
      %v1880 = vpop.f32.mrb[0].mxu0
      %v1881 = vpop.f32.mrb[0].mxu0
      %v1882 = vadd.f32 0.0, %v1881
      %v1883 = vpop.f32.mrb[0].mxu0
      %1884 = vmatprep.mubr.bf16.mxu0 %v1705
      %1885 = vmatmul.mubr.bf16.gmra.mrb[0].mxu0 %v1705
      %v1886 = vpop.f32.mrb[0].mxu0
      %v1887 = vadd.f32 0.0, %v1886
      %v1888 = vpop.f32.mrb[0].mxu0
      %v1889 = vpop.f32.mrb[0].mxu0
      %v1890 = vadd.f32 0.0, %v1889
      %v1891 = vpop.f32.mrb[0].mxu0
      %1892 = vmatprep.mubr.bf16.mxu0 %v1706
      %1893 = vmatmul.mubr.bf16.gmra.mrb[0].mxu0 %v1706
      %v1894 = vpop.f32.mrb[0].mxu0
      %v1895 = vadd.f32 0.0, %v1894
      %v1896 = vpop.f32.mrb[0].mxu0
      %v1897 = vpop.f32.mrb[0].mxu0
      %v1898 = vadd.f32 0.0, %v1897
      %v1899 = vpop.f32.mrb[0].mxu0
      %1900 = vdwg.mxu0
      %v1901 = vadd.f32 %v1655, %v1871
      %v1902 = vadd.f32 %v1656, %v1874
      %v1903 = vadd.f32 %v1657, %v1879
      %v1904 = vadd.f32 %v1658, %v1882
      %v1905 = vadd.f32 %v1659, %v1887
      %v1906 = vadd.f32 %v1660, %v1890
      %v1907 = vadd.f32 %v1661, %v1895
      %v1908 = vadd.f32 %v1662, %v1898
      %v1909 = vld [vmem:[%s5] sm:$0x1]
      %v1911 = vlaneseq
      %v1912 = vshrl.u32 %v1911, 7
      %v1913 = vsub.s32 0, %v1912
      %v1914 = vrot.slane %v1909, %v1913
      %v1916 = vadd.f32 %v1901, %v1914
      %v1917 = vadd.f32 %v1902, %v1914
      %v1918 = vadd.f32 %v1903, %v1914
      %v1919 = vadd.f32 %v1904, %v1914
      %v1920 = vadd.f32 %v1905, %v1914
      %v1921 = vadd.f32 %v1906, %v1914
      %v1922 = vadd.f32 %v1907, %v1914
      %v1923 = vadd.f32 %v1908, %v1914
      %v1924 = vmax.f32 %v1916, 0.0
      %v1925 = vmax.f32 %v1917, 0.0
      %v1926 = vmax.f32 %v1918, 0.0
      %v1927 = vmax.f32 %v1919, 0.0
      %v1928 = vmax.f32 %v1920, 0.0
      %v1929 = vmax.f32 %v1921, 0.0
      %v1930 = vmax.f32 %v1922, 0.0
      %v1931 = vmax.f32 %v1923, 0.0
      %v1932 = vpack.c.bf16 %v1925, %v1924
      %v1933 = vpack.c.bf16 %v1927, %v1926
      %v1934 = vpack.c.bf16 %v1929, %v1928
      %v1935 = vpack.c.bf16 %v1931, %v1930
      %v1936 = vld [vmem:[%s6] sm:$0xf]
      %v1937 = vld [vmem:[%s6 + $0x4] sm:$0xf]
      %v1938 = vld [vmem:[%s6 + $0x8] sm:$0xf]
      %v1939 = vld [vmem:[%s6 + $0xc] sm:$0xf]
      %v1940 = vld [vmem:[%s6 + $0x10] sm:$0xf]
      %v1941 = vld [vmem:[%s6 + $0x14] sm:$0xf]
      %v1942 = vld [vmem:[%s6 + $0x18] sm:$0xf]
      %v1943 = vld [vmem:[%s6 + $0x1c] sm:$0xf]
      %v1944 = vld [vmem:[%s6 + $0x20] sm:$0xf]
      %v1945 = vld [vmem:[%s6 + $0x24] sm:$0xf]
      %v1946 = vld [vmem:[%s6 + $0x28] sm:$0xf]
      %v1947 = vld [vmem:[%s6 + $0x2c] sm:$0xf]
      %v1948 = vld [vmem:[%s6 + $0x30] sm:$0xf]
      %v1949 = vld [vmem:[%s6 + $0x34] sm:$0xf]
      %v1950 = vld [vmem:[%s6 + $0x38] sm:$0xf]
      %v1951 = vld [vmem:[%s6 + $0x3c] sm:$0xf]
      %v1952 = vld [vmem:[%s7] sm:$0x1]
      %v1954 = vlaneseq
      %v1955 = vshrl.u32 %v1954, 7
      %v1956 = vsub.s32 0, %v1955
      %v1957 = vrot.slane %v1952, %v1956
      %v1975 = vunpack.c.l.b16 %v1936
      %v1976 = vunpack.c.l.b16 %v1937
      %v1977 = vunpack.c.l.b16 %v1938
      %v1978 = vunpack.c.l.b16 %v1939
      %v1979 = vunpack.c.l.b16 %v1940
      %v1980 = vunpack.c.l.b16 %v1941
      %v1981 = vunpack.c.l.b16 %v1942
      %v1982 = vunpack.c.l.b16 %v1943
      %v1983 = vunpack.c.l.b16 %v1944
      %v1984 = vunpack.c.l.b16 %v1945
      %v1985 = vunpack.c.l.b16 %v1946
      %v1986 = vunpack.c.l.b16 %v1947
      %v1987 = vunpack.c.l.b16 %v1948
      %v1988 = vunpack.c.l.b16 %v1949
      %v1989 = vunpack.c.l.b16 %v1950
      %v1990 = vunpack.c.l.b16 %v1951
      %v1991 = vpack.c.b16 %v1976, %v1975
      %v1992 = vpack.c.b16 %v1978, %v1977
      %v1993 = vpack.c.b16 %v1980, %v1979
      %v1994 = vpack.c.b16 %v1982, %v1981
      %v1995 = vpack.c.b16 %v1984, %v1983
      %v1996 = vpack.c.b16 %v1986, %v1985
      %v1997 = vpack.c.b16 %v1988, %v1987
      %v1998 = vpack.c.b16 %v1990, %v1989
      %2007 = vmatprep.subr.bf16.mxu0 0
      %2008 = vmatpush1.bf16.msra.mxu0 %v1991
      %2009 = vmatprep.subr.bf16.mxu0 0
      %2010 = vmatpush1.bf16.msra.mxu0 %v1992
      %2011 = vmatprep.subr.bf16.mxu0 0
      %2012 = vmatpush1.bf16.msra.mxu0 %v1993
      %2013 = vmatprep.subr.bf16.mxu0 0
      %2014 = vmatpush1.bf16.msra.mxu0 %v1994
      %2015 = vmatprep.subr.bf16.mxu0 0
      %2016 = vmatpush1.bf16.msra.mxu0 %v1995
      %2017 = vmatprep.subr.bf16.mxu0 0
      %2018 = vmatpush1.bf16.msra.mxu0 %v1996
      %2019 = vmatprep.subr.bf16.mxu0 0
      %2020 = vmatpush1.bf16.msra.mxu0 %v1997
      %2021 = vmatprep.subr.bf16.mxu0 0
      %2022 = vmatpush1.bf16.msra.mxu0 %v1998
      %2023 = vmatprep.subr.bf16.mxu0 0
      %2024 = vmatpush1.bf16.msra.mxu0 0
      %2025 = vmatprep.subr.bf16.mxu0 0
      %2026 = vmatpush1.bf16.msra.mxu0 0
      %2027 = vmatprep.subr.bf16.mxu0 0
      %2028 = vmatpush1.bf16.msra.mxu0 0
      %2029 = vmatprep.subr.bf16.mxu0 0
      %2030 = vmatpush1.bf16.msra.mxu0 0
      %2031 = vmatprep.subr.bf16.mxu0 0
      %2032 = vmatpush1.bf16.msra.mxu0 0
      %2033 = vmatprep.subr.bf16.mxu0 0
      %2034 = vmatpush1.bf16.msra.mxu0 0
      %2035 = vmatprep.subr.bf16.mxu0 0
      %2036 = vmatpush1.bf16.msra.mxu0 0
      %2037 = vmatprep.subr.bf16.mxu0 0
      %2038 = vmatpush1.bf16.msra.mxu0 0
      %2039 = vmatprep.mubr.bf16.mxu0 0
      %2040 = vmatmul.mubr.bf16.gmra.mrb[0].mxu0 %v1932
      %v2041 = vpop.f32.mrb[0].mxu0
      %v2042 = vadd.f32 %v1957, %v2041
      %v2043 = vpop.f32.mrb[0].mxu0
      %v2044 = vpop.f32.mrb[0].mxu0
      %v2045 = vadd.f32 %v1957, %v2044
      %v2046 = vpop.f32.mrb[0].mxu0
      %2047 = vmatprep.mubr.bf16.mxu0 0
      %2048 = vmatmul.mubr.bf16.gmra.mrb[0].mxu0 %v1933
      %v2049 = vpop.f32.mrb[0].mxu0
      %v2050 = vadd.f32 %v1957, %v2049
      %v2051 = vpop.f32.mrb[0].mxu0
      %v2052 = vpop.f32.mrb[0].mxu0
      %v2053 = vadd.f32 %v1957, %v2052
      %v2054 = vpop.f32.mrb[0].mxu0
      %2055 = vmatprep.mubr.bf16.mxu0 0
      %2056 = vmatmul.mubr.bf16.gmra.mrb[0].mxu0 %v1934
      %v2057 = vpop.f32.mrb[0].mxu0
      %v2058 = vadd.f32 %v1957, %v2057
      %v2059 = vpop.f32.mrb[0].mxu0
      %v2060 = vpop.f32.mrb[0].mxu0
      %v2061 = vadd.f32 %v1957, %v2060
      %v2062 = vpop.f32.mrb[0].mxu0
      %2063 = vmatprep.mubr.bf16.mxu0 0
      %2064 = vmatmul.mubr.bf16.gmra.mrb[0].mxu0 %v1935
      %v2065 = vpop.f32.mrb[0].mxu0
      %v2066 = vadd.f32 %v1957, %v2065
      %v2067 = vpop.f32.mrb[0].mxu0
      %v2068 = vpop.f32.mrb[0].mxu0
      %v2069 = vadd.f32 %v1957, %v2068
      %v2070 = vpop.f32.mrb[0].mxu0
      %2071 = vdwg.mxu0
      %v2072 = vunpack.c.l.bf16 %v332
      %v2073 = vunpack.c.l.bf16 %v333
      %v2074 = vunpack.c.l.bf16 %v334
      %v2075 = vunpack.c.l.bf16 %v335
      %v2076 = vunpack.c.l.bf16 %v336
      %v2077 = vunpack.c.l.bf16 %v337
      %v2078 = vunpack.c.l.bf16 %v338
      %v2079 = vunpack.c.l.bf16 %v339
      %v2080 = vadd.f32 %v2042, %v2072
      %v2081 = vadd.f32 %v2045, %v2073
      %v2082 = vadd.f32 %v2050, %v2074
      %v2083 = vadd.f32 %v2053, %v2075
      %v2084 = vadd.f32 %v2058, %v2076
      %v2085 = vadd.f32 %v2061, %v2077
      %v2086 = vadd.f32 %v2066, %v2078
      %v2087 = vadd.f32 %v2069, %v2079
      %v2088 = vmax.f32 %v2080, 0.0
      %v2089 = vmax.f32 %v2081, 0.0
      %v2090 = vmax.f32 %v2082, 0.0
      %v2091 = vmax.f32 %v2083, 0.0
      %v2092 = vmax.f32 %v2084, 0.0
      %v2093 = vmax.f32 %v2085, 0.0
      %v2094 = vmax.f32 %v2086, 0.0
      %v2095 = vmax.f32 %v2087, 0.0
      %v2096 = vpack.c.bf16 %v2089, %v2088
      %v2097 = vpack.c.bf16 %v2091, %v2090
      %v2098 = vpack.c.bf16 %v2093, %v2092
      %v2099 = vpack.c.bf16 %v2095, %v2094
      %v2104 = vunpack.c.l.b16 %v2096
      %v2105 = vunpack.c.h.b16 %v2096
      %v2106 = vunpack.c.l.b16 %v2097
      %v2107 = vunpack.c.h.b16 %v2097
      %v2108 = vunpack.c.l.b16 %v2098
      %v2109 = vunpack.c.h.b16 %v2098
      %v2110 = vunpack.c.l.b16 %v2099
      %v2111 = vunpack.c.h.b16 %v2099
      %v2112 = vpack.c.b16 %v2104, %v2104
      %v2113 = vpack.c.b16 %v2105, %v2105
      %v2114 = vpack.c.b16 %v2106, %v2106
      %v2115 = vpack.c.b16 %v2107, %v2107
      %v2116 = vpack.c.b16 %v2108, %v2108
      %v2117 = vpack.c.b16 %v2109, %v2109
      %v2118 = vpack.c.b16 %v2110, %v2110
      %v2119 = vpack.c.b16 %v2111, %v2111
      %2128 = vst [vmem:[%s329] sm:$0xf] %v2112
      %2129 = vst [vmem:[%s329 + $0x4] sm:$0xf] %v2113
      %2130 = vst [vmem:[%s329 + $0x8] sm:$0xf] %v2114
      %2131 = vst [vmem:[%s329 + $0xc] sm:$0xf] %v2115
      %2132 = vst [vmem:[%s329 + $0x10] sm:$0xf] %v2116
      %2133 = vst [vmem:[%s329 + $0x14] sm:$0xf] %v2117
      %2134 = vst [vmem:[%s329 + $0x18] sm:$0xf] %v2118
      %2135 = vst [vmem:[%s329 + $0x1c] sm:$0xf] %v2119
      %s2136 = smul.u32 8, %s19
      %p2137 = scmp.lt.s32.totalorder %s2136, 15
      %s2138 = scalar_select %p2137, %s2136, 15
      %s2139 = smul.addr %s2138, 4
      %s2140 = scalar_lea.vmem %s8, %s2139
      // Predicated region
      $region53: #{bottleneck_pallas.1} parent=51 // pred_check
        %p2141 = pneg %p215
      $region54: #{bottleneck_pallas.1} parent=51 // pred_check_branch
        %2143 = sbr.rel (%p2141) target = $region56
      $region55: #{bottleneck_pallas.1} parent=51 // pred_region
        %s2144 = smul.u32 8, %s19
      $region56: #{bottleneck_pallas.1} parent=51 // pred_fallthru
        _
    $region52: #{bottleneck_pallas.1} parent=5 // pred_fallthru
      _
    %p2145 = scmp.le.s32.totalorder 2, %s14
    // Predicated region
    $region57: #{bottleneck_pallas.1} parent=5 // pred_check
      %p2146 = pneg %p2145
    $region58: #{bottleneck_pallas.1} parent=5 // pred_check_branch
      %2148 = sbr.rel (%p2146) target = $region60
    $region59: #{bottleneck_pallas.1} parent=5 // pred_region
      %s2149 = ssub.s32 %s14, 2
      // Predicated region
      $region61: #{bottleneck_pallas.1} parent=59 // pred_check
        %p2150 = pneg %p221
      $region62: #{bottleneck_pallas.1} parent=59 // pred_check_branch
        %2152 = sbr.rel (%p2150) target = $region64
      $region63: #{bottleneck_pallas.1} parent=59 // pred_region
        %s2153 = smul.u32 8, %s20
        %p2154 = scmp.lt.s32.totalorder %s2153, 15
        %s2155 = scalar_select %p2154, %s2153, 15
        %s2156 = smul.addr %s2155, 4
        %s2157 = scalar_lea.vmem %s8, %s2156
      $region64: #{bottleneck_pallas.1} parent=59 // pred_fallthru
        _
    $region60: #{bottleneck_pallas.1} parent=5 // pred_fallthru
      _
  $region6: #{bottleneck_pallas.1} parent=0 // loop_footer
    %s18 = sadd.s32 1, %s14
  $region7: #{bottleneck_pallas.1} parent=0 // loop_footer_branch
    %13 = sbr.rel target = $region3
  $region8: #{bottleneck_pallas.1} parent=0 // loop_exit
    _

</llo_original>
